<compile_context>
chip_gen: v5e
topology: v5e:2x2
jax: 0.10.0
libtpu: 0.0.40
codegen_flags: <defaults>
</compile_context>

<pallas_src>
import jax
import jax.numpy as jnp
from jax.experimental import pallas as pl
from jax.experimental.pallas import tpu as pltpu


def block_kernel(x_ref, w0_ref, b0_ref, w1_ref, b1_ref, o_ref):
    x = x_ref[...]
    x_f32 = x.astype(jnp.float32)

    # h = relu(x @ W0 + b0)   (MXU, f32 accumulation)
    h = jnp.dot(x, w0_ref[...], preferred_element_type=jnp.float32)
    h = jnp.maximum(h + b0_ref[...].astype(jnp.float32), 0.0)

    # y = relu(h @ W1 + b1 + x)   (residual add + outer clamp, in f32)
    y = jnp.dot(h.astype(w1_ref.dtype), w1_ref[...],
                preferred_element_type=jnp.float32)
    y = y + b1_ref[...].astype(jnp.float32) + x_f32
    o_ref[...] = jnp.maximum(y, 0.0).astype(o_ref.dtype)


def _choose_batch_tile(batch, i_dim, requested):
    """Pick the batch tile (rows per grid step)."""
    # Cap so double-buffered f32 (x + out) tiles fit comfortably inside the
    # 16 MiB default scoped-VMEM limit on v5e (leave headroom for weights).
    vmem_budget_bytes = 12 * 1024 * 1024
    bytes_per_row = 2 * 2 * i_dim * 4          # (x + out) * 2 buffers * f32
    cap = max(8, vmem_budget_bytes // bytes_per_row)

    tb = max(1, min(requested, batch, cap))

    # v7x has 2 TensorCores: keep >= 2 grid steps whenever the batch allows so
    # the "parallel" grid axis can be sharded across both cores.
    if tb >= batch and batch >= 16:
        tb = (batch + 1) // 2

    # Sublane alignment: the block's second-to-last dim must be a multiple of
    # 8 unless it spans the full batch.
    if tb < batch:
        tb = max(8, (tb // 8) * 8)
    return min(tb, batch)


def block_forward(x, w0, b0, w1, b1, *, batch_tile=1024,
                  single_buffer_params=True):
    """x: (B, iDim); w0: (iDim, hDim); b0: (1, hDim); w1: (hDim, iDim); b1: (1, iDim)."""
    batch, i_dim = x.shape
    h_dim = w0.shape[1]
    tb = _choose_batch_tile(batch, i_dim, batch_tile)

    def build(resident_mode):
        kw = {} if resident_mode is None else {"pipeline_mode": resident_mode}
        grid_spec = pltpu.PrefetchScalarGridSpec(
            num_scalar_prefetch=0,
            grid=(pl.cdiv(batch, tb),),
            in_specs=[
                # x tile: one batch block per grid step (double-buffered stream)
                pl.BlockSpec((tb, i_dim), lambda i: (i, 0)),
                # Parameters: constant index_map -> resident in VMEM across steps.
                pl.BlockSpec((i_dim, h_dim), lambda i: (0, 0), **kw),   # W0
                pl.BlockSpec((1, h_dim), lambda i: (0, 0), **kw),       # b0
                pl.BlockSpec((h_dim, i_dim), lambda i: (0, 0), **kw),   # W1
                pl.BlockSpec((1, i_dim), lambda i: (0, 0), **kw),       # b1
            ],
            out_specs=pl.BlockSpec((tb, i_dim), lambda i: (i, 0)),
        )
        return pl.pallas_call(
            block_kernel,
            out_shape=jax.ShapeDtypeStruct((batch, i_dim), x.dtype),
            grid_spec=grid_spec,
            compiler_params=pltpu.CompilerParams(
                dimension_semantics=("parallel",)),
        )

    if single_buffer_params:
        try:
            # Single-buffer the resident weights/biases (they are never re-DMA'd).
            return build(pl.Buffered(1))(x, w0, b0, w1, b1)
        except Exception:
            # Fallback for runtimes that reject single-buffer pipeline_mode:
            # identical semantics, just a wasted second weight buffer.
            pass
    return build(None)(x, w0, b0, w1, b1)


def block_reference(x, w0, b0, w1, b1):
    """Pure-JAX f32 reference mirroring Block.forward."""
    xf = x.astype(jnp.float32)
    h = jnp.dot(xf, w0.astype(jnp.float32),
                preferred_element_type=jnp.float32) + b0.astype(jnp.float32)
    h = jnp.maximum(h, 0.0)
    y = jnp.dot(h, w1.astype(jnp.float32),
                preferred_element_type=jnp.float32) + b1.astype(jnp.float32)
    return jnp.maximum(y + xf, 0.0)


if __name__ == "__main__":
    # Lane-dense, MXU-friendly shapes (multiples of 128); batch large enough
    # that the tile chooser produces >= 2 grid steps (feeds both TCs on v7x)
    # while staying small and fast.
    batch, i_dim, h_dim = 512, 128, 256

    key = jax.random.PRNGKey(0)
    kx, kw0, kb0, kw1, kb1 = jax.random.split(key, 5)

    x = jax.random.normal(kx, (batch, i_dim), dtype=jnp.float32)
    # Block parameters, pre-transposed to (in, out), kept in f32 like nn.Linear.
    w0 = jax.random.normal(kw0, (i_dim, h_dim), jnp.float32) * 0.05
    b0 = jax.random.normal(kb0, (1, h_dim), jnp.float32) * 0.5
    w1 = jax.random.normal(kw1, (h_dim, i_dim), jnp.float32) * 0.05
    b1 = jax.random.normal(kb1, (1, i_dim), jnp.float32) * 0.5

    out = jax.block_until_ready(block_forward(x, w0, b0, w1, b1))
    ref = block_reference(x, w0, b0, w1, b1)

    assert out.shape == (batch, i_dim)
    max_err = float(jnp.max(jnp.abs(out - ref)))
    # Tolerance allows for reduced-precision MXU matmul paths on either side;
    # still far below the magnitude of any structural bug (missing bias /
    # residual / relu would show O(0.1..1) errors).
    assert jnp.allclose(out, ref, atol=5e-2, rtol=5e-2), max_err

    print("KERNEL_OK")
</pallas_src>

<mosaic_0001>
module attributes {stable_mosaic.version = 11 : i64} {
  func.func @block_kernel(%arg0: i32, %arg1: memref<256x128xf32, #tpu.memory_space<vmem>>, %arg2: memref<128x256xf32, #tpu.memory_space<vmem>>, %arg3: memref<1x256xf32, #tpu.memory_space<vmem>>, %arg4: memref<256x128xf32, #tpu.memory_space<vmem>>, %arg5: memref<1x128xf32, #tpu.memory_space<vmem>>, %arg6: memref<256x128xf32, #tpu.memory_space<vmem>>) attributes {dimension_semantics = [#tpu.dimension_semantics<parallel>], iteration_bounds = array<i64: 2>, scalar_prefetch = 0 : i64, scratch_operands = 0 : i64, tpu.core_type = #tpu.core_type<tc>, window_params = [{transform_indices = @transform_0, window_bounds = array<i64: 256, 128>}, {pipeline_mode = #tpu.pipeline_mode<synchronous>, transform_indices = @transform_1, window_bounds = array<i64: 128, 256>}, {pipeline_mode = #tpu.pipeline_mode<synchronous>, transform_indices = @transform_2, window_bounds = array<i64: 1, 256>}, {pipeline_mode = #tpu.pipeline_mode<synchronous>, transform_indices = @transform_3, window_bounds = array<i64: 256, 128>}, {pipeline_mode = #tpu.pipeline_mode<synchronous>, transform_indices = @transform_4, window_bounds = array<i64: 1, 128>}, {transform_indices = @transform_5, window_bounds = array<i64: 256, 128>}]} {
    %c0 = arith.constant 0 : index
    %c0_0 = arith.constant 0 : index
    %0 = vector.load %arg1[%c0, %c0_0] : memref<256x128xf32, #tpu.memory_space<vmem>>, vector<256x128xf32>
    %c0_1 = arith.constant 0 : index
    %c0_2 = arith.constant 0 : index
    %1 = vector.load %arg2[%c0_1, %c0_2] : memref<128x256xf32, #tpu.memory_space<vmem>>, vector<128x256xf32>
    %cst = arith.constant dense<0.000000e+00> : vector<256x256xf32>
    %2 = tpu.matmul %0, %1, %cst {dimension_numbers = #tpu.dot_dimension_numbers<[1], [0], [0], [1], [0, 0, 1, 1], [], []>} : vector<256x128xf32>, vector<128x256xf32>, vector<256x256xf32> -> vector<256x256xf32>
    %c0_3 = arith.constant 0 : index
    %c0_4 = arith.constant 0 : index
    %3 = vector.load %arg3[%c0_3, %c0_4] : memref<1x256xf32, #tpu.memory_space<vmem>>, vector<1x256xf32>
    %4 = vector.broadcast %3 : vector<1x256xf32> to vector<256x256xf32>
    %5 = arith.addf %2, %4 : vector<256x256xf32>
    %cst_5 = arith.constant 0.000000e+00 : f32
    %6 = vector.broadcast %cst_5 : f32 to vector<256x256xf32>
    %7 = arith.maximumf %5, %6 : vector<256x256xf32>
    %c0_6 = arith.constant 0 : index
    %c0_7 = arith.constant 0 : index
    %8 = vector.load %arg4[%c0_6, %c0_7] : memref<256x128xf32, #tpu.memory_space<vmem>>, vector<256x128xf32>
    %cst_8 = arith.constant dense<0.000000e+00> : vector<256x128xf32>
    %9 = tpu.matmul %7, %8, %cst_8 {dimension_numbers = #tpu.dot_dimension_numbers<[1], [0], [0], [1], [0, 0, 1, 1], [], []>} : vector<256x256xf32>, vector<256x128xf32>, vector<256x128xf32> -> vector<256x128xf32>
    %c0_9 = arith.constant 0 : index
    %c0_10 = arith.constant 0 : index
    %10 = vector.load %arg5[%c0_9, %c0_10] : memref<1x128xf32, #tpu.memory_space<vmem>>, vector<1x128xf32>
    %11 = vector.broadcast %10 : vector<1x128xf32> to vector<256x128xf32>
    %12 = arith.addf %9, %11 : vector<256x128xf32>
    %13 = arith.addf %12, %0 : vector<256x128xf32>
    %cst_11 = arith.constant 0.000000e+00 : f32
    %14 = vector.broadcast %cst_11 : f32 to vector<256x128xf32>
    %15 = arith.maximumf %13, %14 : vector<256x128xf32>
    %c0_12 = arith.constant 0 : index
    %c0_13 = arith.constant 0 : index
    %16 = vector.load %arg6[%c0_12, %c0_13] : memref<256x128xf32, #tpu.memory_space<vmem>>, vector<256x128xf32>
    tpu.vector_store %arg6[%c0_12, %c0_13], %15 {strides = array<i32>} : memref<256x128xf32, #tpu.memory_space<vmem>>, vector<256x128xf32>,
    return
  }
  func.func @transform_0(%arg0: i32) -> (i32, i32) {
    %c0_i32 = arith.constant 0 : i32
    %c0_i32_0 = arith.constant 0 : i32
    return %arg0, %c0_i32 : i32, i32
  }
  func.func @transform_1(%arg0: i32) -> (i32, i32) {
    %c0_i32 = arith.constant 0 : i32
    %c0_i32_0 = arith.constant 0 : i32
    %c0_i32_1 = arith.constant 0 : i32
    return %c0_i32, %c0_i32_0 : i32, i32
  }
  func.func @transform_2(%arg0: i32) -> (i32, i32) {
    %c0_i32 = arith.constant 0 : i32
    %c0_i32_0 = arith.constant 0 : i32
    %c0_i32_1 = arith.constant 0 : i32
    return %c0_i32, %c0_i32_0 : i32, i32
  }
  func.func @transform_3(%arg0: i32) -> (i32, i32) {
    %c0_i32 = arith.constant 0 : i32
    %c0_i32_0 = arith.constant 0 : i32
    %c0_i32_1 = arith.constant 0 : i32
    return %c0_i32, %c0_i32_0 : i32, i32
  }
  func.func @transform_4(%arg0: i32) -> (i32, i32) {
    %c0_i32 = arith.constant 0 : i32
    %c0_i32_0 = arith.constant 0 : i32
    %c0_i32_1 = arith.constant 0 : i32
    return %c0_i32, %c0_i32_0 : i32, i32
  }
  func.func @transform_5(%arg0: i32) -> (i32, i32) {
    %c0_i32 = arith.constant 0 : i32
    %c0_i32_0 = arith.constant 0 : i32
    return %arg0, %c0_i32 : i32, i32
  }
}

module attributes {stable_mosaic.version = 11 : i64} {
  func.func @block_kernel(%arg0: i32, %arg1: memref<256x128xf32, #tpu.memory_space<vmem>>, %arg2: memref<128x256xf32, #tpu.memory_space<vmem>>, %arg3: memref<1x256xf32, #tpu.memory_space<vmem>>, %arg4: memref<256x128xf32, #tpu.memory_space<vmem>>, %arg5: memref<1x128xf32, #tpu.memory_space<vmem>>, %arg6: memref<256x128xf32, #tpu.memory_space<vmem>>) attributes {dimension_semantics = [#tpu.dimension_semantics<parallel>], iteration_bounds = array<i64: 2>, scalar_prefetch = 0 : i64, scratch_operands = 0 : i64, tpu.core_type = #tpu.core_type<tc>, window_params = [{transform_indices = @transform_0, window_bounds = array<i64: 256, 128>}, {pipeline_mode = #tpu.pipeline_mode<synchronous>, transform_indices = @transform_1, window_bounds = array<i64: 128, 256>}, {pipeline_mode = #tpu.pipeline_mode<synchronous>, transform_indices = @transform_2, window_bounds = array<i64: 1, 256>}, {pipeline_mode = #tpu.pipeline_mode<synchronous>, transform_indices = @transform_3, window_bounds = array<i64: 256, 128>}, {pipeline_mode = #tpu.pipeline_mode<synchronous>, transform_indices = @transform_4, window_bounds = array<i64: 1, 128>}, {transform_indices = @transform_5, window_bounds = array<i64: 256, 128>}]} {
    %c0 = arith.constant 0 : index
    %c0_0 = arith.constant 0 : index
    %0 = vector.load %arg1[%c0, %c0_0] : memref<256x128xf32, #tpu.memory_space<vmem>>, vector<256x128xf32>
    %c0_1 = arith.constant 0 : index
    %c0_2 = arith.constant 0 : index
    %1 = vector.load %arg2[%c0_1, %c0_2] : memref<128x256xf32, #tpu.memory_space<vmem>>, vector<128x256xf32>
    %cst = arith.constant dense<0.000000e+00> : vector<256x256xf32>
    %2 = tpu.matmul %0, %1, %cst {dimension_numbers = #tpu.dot_dimension_numbers<[1], [0], [0], [1], [0, 0, 1, 1], [], []>} : vector<256x128xf32>, vector<128x256xf32>, vector<256x256xf32> -> vector<256x256xf32>
    %c0_3 = arith.constant 0 : index
    %c0_4 = arith.constant 0 : index
    %3 = vector.load %arg3[%c0_3, %c0_4] : memref<1x256xf32, #tpu.memory_space<vmem>>, vector<1x256xf32>
    %4 = vector.broadcast %3 : vector<1x256xf32> to vector<256x256xf32>
    %5 = arith.addf %2, %4 : vector<256x256xf32>
    %cst_5 = arith.constant 0.000000e+00 : f32
    %6 = vector.broadcast %cst_5 : f32 to vector<256x256xf32>
    %7 = arith.maximumf %5, %6 : vector<256x256xf32>
    %c0_6 = arith.constant 0 : index
    %c0_7 = arith.constant 0 : index
    %8 = vector.load %arg4[%c0_6, %c0_7] : memref<256x128xf32, #tpu.memory_space<vmem>>, vector<256x128xf32>
    %cst_8 = arith.constant dense<0.000000e+00> : vector<256x128xf32>
    %9 = tpu.matmul %7, %8, %cst_8 {dimension_numbers = #tpu.dot_dimension_numbers<[1], [0], [0], [1], [0, 0, 1, 1], [], []>} : vector<256x256xf32>, vector<256x128xf32>, vector<256x128xf32> -> vector<256x128xf32>
    %c0_9 = arith.constant 0 : index
    %c0_10 = arith.constant 0 : index
    %10 = vector.load %arg5[%c0_9, %c0_10] : memref<1x128xf32, #tpu.memory_space<vmem>>, vector<1x128xf32>
    %11 = vector.broadcast %10 : vector<1x128xf32> to vector<256x128xf32>
    %12 = arith.addf %9, %11 : vector<256x128xf32>
    %13 = arith.addf %12, %0 : vector<256x128xf32>
    %cst_11 = arith.constant 0.000000e+00 : f32
    %14 = vector.broadcast %cst_11 : f32 to vector<256x128xf32>
    %15 = arith.maximumf %13, %14 : vector<256x128xf32>
    %c0_12 = arith.constant 0 : index
    %c0_13 = arith.constant 0 : index
    %16 = vector.load %arg6[%c0_12, %c0_13] : memref<256x128xf32, #tpu.memory_space<vmem>>, vector<256x128xf32>
    tpu.vector_store %arg6[%c0_12, %c0_13], %15 {strides = array<i32>} : memref<256x128xf32, #tpu.memory_space<vmem>>, vector<256x128xf32>,
    return
  }
  func.func @transform_0(%arg0: i32) -> (i32, i32) {
    %c0_i32 = arith.constant 0 : i32
    %c0_i32_0 = arith.constant 0 : i32
    return %arg0, %c0_i32 : i32, i32
  }
  func.func @transform_1(%arg0: i32) -> (i32, i32) {
    %c0_i32 = arith.constant 0 : i32
    %c0_i32_0 = arith.constant 0 : i32
    %c0_i32_1 = arith.constant 0 : i32
    return %c0_i32, %c0_i32_0 : i32, i32
  }
  func.func @transform_2(%arg0: i32) -> (i32, i32) {
    %c0_i32 = arith.constant 0 : i32
    %c0_i32_0 = arith.constant 0 : i32
    %c0_i32_1 = arith.constant 0 : i32
    return %c0_i32, %c0_i32_0 : i32, i32
  }
  func.func @transform_3(%arg0: i32) -> (i32, i32) {
    %c0_i32 = arith.constant 0 : i32
    %c0_i32_0 = arith.constant 0 : i32
    %c0_i32_1 = arith.constant 0 : i32
    return %c0_i32, %c0_i32_0 : i32, i32
  }
  func.func @transform_4(%arg0: i32) -> (i32, i32) {
    %c0_i32 = arith.constant 0 : i32
    %c0_i32_0 = arith.constant 0 : i32
    %c0_i32_1 = arith.constant 0 : i32
    return %c0_i32, %c0_i32_0 : i32, i32
  }
  func.func @transform_5(%arg0: i32) -> (i32, i32) {
    %c0_i32 = arith.constant 0 : i32
    %c0_i32_0 = arith.constant 0 : i32
    return %arg0, %c0_i32 : i32, i32
  }
}

</mosaic_0001>

<llo_original>
// kernel: tpu_custom_call.1
$region0: #{tpu_custom_call.1}
  #allocation0 [shape = 'u32[]', space=smem, size = 0x4, offset = 0x4, fixed_abs, tag = 'smem constant byte address 0x4 - core index']
  #allocation1 [shape = 'u32[72,128]{1,0:T(1,128)}', space=vmem, size = 0x9000, scoped, tag = 'internal scratch']
  %s0 = inlined_call_operand.hbm [shape: f32[512,128], index: 0, kind: input, shape index: {}]
  %s1 = inlined_call_operand.hbm [shape: f32[128,256], index: 1, kind: input, shape index: {}]
  %s2 = inlined_call_operand.hbm [shape: f32[1,256], index: 2, kind: input, shape index: {}]
  %s3 = inlined_call_operand.hbm [shape: f32[256,128], index: 3, kind: input, shape index: {}]
  %s4 = inlined_call_operand.vmem [shape: f32[1,128], index: 4, kind: input, shape index: {}]
  %s5 = inlined_call_operand.hbm [shape: f32[512,128], index: 5, kind: output, shape index: {}]
  %s6 = sld [smem:[#allocation0]]
  $region69: #{tpu_custom_call.1} parent=0
    _
  %s8 = ssub.s32 1, %s6
  %s9 = scalar_select 0, %s8, %s6
  $region1: #{tpu_custom_call.1} parent=0
    #allocation2 [shape = 'u8[262144]{0}', space=vmem, size = 0x40000, scoped, tag = 'input window, operand 0']
    #allocation3 [shape = 's32[2]{0}', space=sflag, size = 0x8, scoped, tag = 'scoped memory for tpu_custom_call.1']
    #allocation4 [shape = 's32[2]{0}', space=sflag, size = 0x8, scoped, tag = 'scoped memory for tpu_custom_call.1']
    #allocation5 [shape = 'u8[131072]{0}', space=vmem, size = 0x20000, scoped, tag = 'input window, operand 1, single buffered']
    #allocation6 [shape = 's32[1]{0}', space=sflag, size = 0x4, scoped, tag = 'scoped memory for tpu_custom_call.1']
    #allocation7 [shape = 'u8[1024]{0}', space=vmem, size = 0x400, scoped, tag = 'input window, operand 2, single buffered']
    #allocation8 [shape = 'u8[131072]{0}', space=vmem, size = 0x20000, scoped, tag = 'input window, operand 3, single buffered']
    #allocation9 [shape = 's32[1]{0}', space=sflag, size = 0x4, scoped, tag = 'scoped memory for tpu_custom_call.1']
    #allocation10 [shape = 'u8[262144]{0}', space=vmem, size = 0x40000, scoped, tag = 'output window, operand 0']
    %10 = vsyncpa [#allocation3], 0
    %s11 = scalar_lea.sflag [#allocation3], 1
    %12 = vsyncpa %s11, 0
    %13 = vsyncpa [#allocation6], 0
    %14 = vsyncpa [#allocation9], 0
    %15 = vsyncpa [#allocation4], 0
    %s16 = scalar_lea.sflag [#allocation4], 1
    %17 = vsyncpa %s16, 0
    loop: start=0, step=1, limit=4
    $region2: #{tpu_custom_call.1} parent=1 // loop_pre_header
      _
    $region3: #{tpu_custom_call.1} parent=1 // loop_header
      %s19 = sphi 0, %s23
      %p20 = scmp.ge.s32.totalorder %s19, 4
      %s29 = sphi 0, %s31
      %s32 = sphi 0, %s29
      %s33 = sphi 0, %s32
      %s49 = sphi 0, %s33
      %s53 = sphi 0, %s53
      %s55 = sphi 0, %s53
      %s56 = sphi 0, %s55
      %s70 = sphi 0, %s56
      %s74 = sphi 0, %s74
      %s76 = sphi 0, %s74
      %s77 = sphi 0, %s76
      %s91 = sphi 0, %s77
      %s95 = sphi 0, %s95
      %s97 = sphi 0, %s95
      %s98 = sphi 0, %s97
      %s112 = sphi 0, %s98
      %s116 = sphi 0, %s116
      %s118 = sphi 0, %s116
      %s119 = sphi 0, %s118
      %s133 = sphi 0, %s119
      %s139 = sphi 0, %s141
      %s142 = sphi 0, %s139
      %s143 = sphi 0, %s142
      %s159 = sphi 0, %s143
    $region4: #{tpu_custom_call.1} parent=1 // loop_header_branch
      %22 = sbr.rel (%p20) target = $region8
    $region5: #{tpu_custom_call.1} parent=1 // loop_body
      %s24 = ssub.s32 %s19, 1
      %s25 = ssub.s32 %s19, 2
      %s26 = sadd.s32 %s19, 1
      %s27 = ssub.s32 %s19, %s26
      %p28 = scmp.eq.s32.totalorder %s27, 0
      %s30 = sadd.s32 %s29, 1
      %s31 = scalar_select %p28, %s29, %s30
      %p34 = pneg %p28
      %p35 = scmp.eq.s32.totalorder %s19, 1
      %p36 = por %p34, %p35
      %p37 = scmp.ne.s32.totalorder %s29, %s32
      %p38 = scmp.eq.s32.totalorder %s19, 0
      %p39 = por %p37, %p38
      %p40 = scmp.ne.s32.totalorder %s29, %s32
      %p41 = scmp.eq.s32.totalorder %s24, 1
      %p42 = por %p40, %p41
      %p43 = scmp.ne.s32.totalorder %s32, %s33
      %p44 = scmp.eq.s32.totalorder %s24, 0
      %p45 = por %p43, %p44
      %p46 = scmp.ne.s32.totalorder %s32, %s33
      %p47 = scmp.eq.s32.totalorder %s25, 1
      %p48 = por %p46, %p47
      %p50 = scmp.ne.s32.totalorder %s33, %s49
      %p51 = scmp.eq.s32.totalorder %s25, 0
      %p52 = por %p50, %p51
      %s54 = sadd.s32 %s53, 1
      %p57 = scmp.eq.s32.totalorder %s19, 1
      %p58 = scmp.ne.s32.totalorder %s53, %s55
      %p59 = scmp.eq.s32.totalorder %s19, 0
      %p60 = por %p58, %p59
      %p61 = scmp.ne.s32.totalorder %s53, %s55
      %p62 = scmp.eq.s32.totalorder %s24, 1
      %p63 = por %p61, %p62
      %p64 = scmp.ne.s32.totalorder %s55, %s56
      %p65 = scmp.eq.s32.totalorder %s24, 0
      %p66 = por %p64, %p65
      %p67 = scmp.ne.s32.totalorder %s55, %s56
      %p68 = scmp.eq.s32.totalorder %s25, 1
      %p69 = por %p67, %p68
      %p71 = scmp.ne.s32.totalorder %s56, %s70
      %p72 = scmp.eq.s32.totalorder %s25, 0
      %p73 = por %p71, %p72
      %s75 = sadd.s32 %s74, 1
      %p78 = scmp.eq.s32.totalorder %s19, 1
      %p79 = scmp.ne.s32.totalorder %s74, %s76
      %p80 = scmp.eq.s32.totalorder %s19, 0
      %p81 = por %p79, %p80
      %p82 = scmp.ne.s32.totalorder %s74, %s76
      %p83 = scmp.eq.s32.totalorder %s24, 1
      %p84 = por %p82, %p83
      %p85 = scmp.ne.s32.totalorder %s76, %s77
      %p86 = scmp.eq.s32.totalorder %s24, 0
      %p87 = por %p85, %p86
      %p88 = scmp.ne.s32.totalorder %s76, %s77
      %p89 = scmp.eq.s32.totalorder %s25, 1
      %p90 = por %p88, %p89
      %p92 = scmp.ne.s32.totalorder %s77, %s91
      %p93 = scmp.eq.s32.totalorder %s25, 0
      %p94 = por %p92, %p93
      %s96 = sadd.s32 %s95, 1
      %p99 = scmp.eq.s32.totalorder %s19, 1
      %p100 = scmp.ne.s32.totalorder %s95, %s97
      %p101 = scmp.eq.s32.totalorder %s19, 0
      %p102 = por %p100, %p101
      %p103 = scmp.ne.s32.totalorder %s95, %s97
      %p104 = scmp.eq.s32.totalorder %s24, 1
      %p105 = por %p103, %p104
      %p106 = scmp.ne.s32.totalorder %s97, %s98
      %p107 = scmp.eq.s32.totalorder %s24, 0
      %p108 = por %p106, %p107
      %p109 = scmp.ne.s32.totalorder %s97, %s98
      %p110 = scmp.eq.s32.totalorder %s25, 1
      %p111 = por %p109, %p110
      %p113 = scmp.ne.s32.totalorder %s98, %s112
      %p114 = scmp.eq.s32.totalorder %s25, 0
      %p115 = por %p113, %p114
      %s117 = sadd.s32 %s116, 1
      %p120 = scmp.eq.s32.totalorder %s19, 1
      %p121 = scmp.ne.s32.totalorder %s116, %s118
      %p122 = scmp.eq.s32.totalorder %s19, 0
      %p123 = por %p121, %p122
      %p124 = scmp.ne.s32.totalorder %s116, %s118
      %p125 = scmp.eq.s32.totalorder %s24, 1
      %p126 = por %p124, %p125
      %p127 = scmp.ne.s32.totalorder %s118, %s119
      %p128 = scmp.eq.s32.totalorder %s24, 0
      %p129 = por %p127, %p128
      %p130 = scmp.ne.s32.totalorder %s118, %s119
      %p131 = scmp.eq.s32.totalorder %s25, 1
      %p132 = por %p130, %p131
      %p134 = scmp.ne.s32.totalorder %s119, %s133
      %p135 = scmp.eq.s32.totalorder %s25, 0
      %p136 = por %p134, %p135
      %s137 = ssub.s32 %s19, %s26
      %p138 = scmp.eq.s32.totalorder %s137, 0
      %s140 = sadd.s32 %s139, 1
      %s141 = scalar_select %p138, %s139, %s140
      %p144 = pneg %p138
      %p145 = scmp.eq.s32.totalorder %s19, 1
      %p146 = por %p144, %p145
      %p147 = scmp.ne.s32.totalorder %s139, %s142
      %p148 = scmp.eq.s32.totalorder %s19, 0
      %p149 = por %p147, %p148
      %p150 = scmp.ne.s32.totalorder %s139, %s142
      %p151 = scmp.eq.s32.totalorder %s24, 1
      %p152 = por %p150, %p151
      %p153 = scmp.ne.s32.totalorder %s142, %s143
      %p154 = scmp.eq.s32.totalorder %s24, 0
      %p155 = por %p153, %p154
      %p156 = scmp.ne.s32.totalorder %s142, %s143
      %p157 = scmp.eq.s32.totalorder %s25, 1
      %p158 = por %p156, %p157
      %p160 = scmp.ne.s32.totalorder %s143, %s159
      %p161 = scmp.eq.s32.totalorder %s25, 0
      %p162 = por %p160, %p161
      %p163 = scmp.le.s32.totalorder 1, %s19
      %p164 = scmp.lt.s32.totalorder %s19, 3
      %p165 = pnand %p163, %p164
      %p166 = pneg %p165
      // Predicated region
      $region9: #{tpu_custom_call.1} parent=5 // pred_check
        _
      $region10: #{tpu_custom_call.1} parent=5 // pred_check_branch
        %168 = sbr.rel (%p165) target = $region12
      $region11: #{tpu_custom_call.1} parent=5 // pred_region
        %s169 = ssub.s32 %s19, 1
        // Predicated region
        $region13: #{tpu_custom_call.1} parent=11 // pred_check
          %p170 = pneg %p66
        $region14: #{tpu_custom_call.1} parent=11 // pred_check_branch
          %172 = sbr.rel (%p170) target = $region16
        $region15: #{tpu_custom_call.1} parent=11 // pred_region
          %174 = vsyncadd [#allocation6], 0
          %s175 = sshll.u32 %s1, 4
          %s176 = int_to_ptr.hbm [resolvable:$true] %s175
          %s177 = sshll.u32 [#allocation5], 4
          %s178 = int_to_ptr.vmem [resolvable:$true] %s177
          %183 = dma.hbm_to_vmem [thread:$0]  %s176, 4096, %s178, [#allocation6], 256, 256, 16
        $region16: #{tpu_custom_call.1} parent=11 // pred_fallthru
          _
        // Predicated region
        $region17: #{tpu_custom_call.1} parent=11 // pred_check
          %p184 = pneg %p87
        $region18: #{tpu_custom_call.1} parent=11 // pred_check_branch
          %186 = sbr.rel (%p184) target = $region20
        $region19: #{tpu_custom_call.1} parent=11 // pred_region
          %188 = vsyncadd [#allocation6], 0
          %s190 = sshll.u32 %s2, 4
          %s191 = int_to_ptr.hbm [resolvable:$true] %s190
          %s192 = sshll.u32 [#allocation7], 4
          %s193 = int_to_ptr.vmem [resolvable:$true] %s192
          %195 = dma.hbm_to_vmem [thread:$0]  %s191, 32, %s193, [#allocation6]
        $region20: #{tpu_custom_call.1} parent=11 // pred_fallthru
          _
        // Predicated region
        $region21: #{tpu_custom_call.1} parent=11 // pred_check
          %p196 = pneg %p108
        $region22: #{tpu_custom_call.1} parent=11 // pred_check_branch
          %198 = sbr.rel (%p196) target = $region24
        $region23: #{tpu_custom_call.1} parent=11 // pred_region
          %200 = vsyncadd [#allocation9], 0
          %s201 = sshll.u32 %s3, 4
          %s202 = int_to_ptr.hbm [resolvable:$true] %s201
          %s203 = sshll.u32 [#allocation8], 4
          %s204 = int_to_ptr.vmem [resolvable:$true] %s203
          %209 = dma.hbm_to_vmem [thread:$0]  %s202, 4096, %s204, [#allocation9], 128, 128, 8
        $region24: #{tpu_custom_call.1} parent=11 // pred_fallthru
          _
        // Predicated region
        $region25: #{tpu_custom_call.1} parent=11 // pred_check
          %p210 = pneg %p129
        $region26: #{tpu_custom_call.1} parent=11 // pred_check_branch
          %212 = sbr.rel (%p210) target = $region28
        $region27: #{tpu_custom_call.1} parent=11 // pred_region
          _
        $region28: #{tpu_custom_call.1} parent=11 // pred_fallthru
          _
      $region12: #{tpu_custom_call.1} parent=5 // pred_fallthru
        _
      %p213 = scmp.lt.s32.totalorder %s19, 2
      // Predicated region
      $region29: #{tpu_custom_call.1} parent=5 // pred_check
        %p214 = pneg %p213
      $region30: #{tpu_custom_call.1} parent=5 // pred_check_branch
        %216 = sbr.rel (%p214) target = $region32
      $region31: #{tpu_custom_call.1} parent=5 // pred_region
        // Predicated region
        $region33: #{tpu_custom_call.1} parent=31 // pred_check
          %p217 = pneg %p39
        $region34: #{tpu_custom_call.1} parent=31 // pred_check_branch
          %219 = sbr.rel (%p217) target = $region36
        $region35: #{tpu_custom_call.1} parent=31 // pred_region
          %s220 = sand.u32 %s29, 1
          %s221 = scalar_lea.sflag [#allocation3], %s220
          %s222 = sand.u32 %s29, 1
          %s223 = smul.addr %s222, 256
          %s224 = scalar_lea.vmem [#allocation2], %s223
          %s225 = smul.u32 32, %s19
          %227 = vsyncadd %s221, 0
          %s228 = smul.addr %s225, 8
          %s229 = scalar_lea.hbm %s0, %s228
          %s230 = sshll.u32 %s229, 4
          %s231 = int_to_ptr.hbm [resolvable:$true] %s230
          %s232 = sshll.u32 %s224, 4
          %s233 = int_to_ptr.vmem [resolvable:$true] %s232
          %238 = dma.hbm_to_vmem [thread:$0]  %s231, 4096, %s233, %s221, 128, 128, 8
        $region36: #{tpu_custom_call.1} parent=31 // pred_fallthru
          _
      $region32: #{tpu_custom_call.1} parent=5 // pred_fallthru
        _
      %p239 = scmp.le.s32.totalorder 1, %s19
      %p240 = scmp.lt.s32.totalorder %s19, 3
      %p241 = pnand %p239, %p240
      %p242 = pneg %p241
      // Predicated region
      $region37: #{tpu_custom_call.1} parent=5 // pred_check
        _
      $region38: #{tpu_custom_call.1} parent=5 // pred_check_branch
        %244 = sbr.rel (%p241) target = $region40
      $region39: #{tpu_custom_call.1} parent=5 // pred_region
        %s245 = ssub.s32 %s19, 1
        %s246 = sand.u32 %s32, 1
        %s247 = scalar_lea.sflag [#allocation3], %s246
        %s248 = sand.u32 %s32, 1
        %s249 = smul.addr %s248, 256
        %s250 = scalar_lea.vmem [#allocation2], %s249
        // Predicated region
        $region41: #{tpu_custom_call.1} parent=39 // pred_check
          %p251 = pneg %p45
        $region42: #{tpu_custom_call.1} parent=39 // pred_check_branch
          %253 = sbr.rel (%p251) target = $region44
        $region43: #{tpu_custom_call.1} parent=39 // pred_region
          %255 = dma.done %s247, 4096
        $region44: #{tpu_custom_call.1} parent=39 // pred_fallthru
          _
        // Predicated region
        $region45: #{tpu_custom_call.1} parent=39 // pred_check
          %p256 = pneg %p66
        $region46: #{tpu_custom_call.1} parent=39 // pred_check_branch
          %258 = sbr.rel (%p256) target = $region48
        $region47: #{tpu_custom_call.1} parent=39 // pred_region
          %260 = dma.done [#allocation6], 4096
        $region48: #{tpu_custom_call.1} parent=39 // pred_fallthru
          _
        // Predicated region
        $region49: #{tpu_custom_call.1} parent=39 // pred_check
          %p261 = pneg %p87
        $region50: #{tpu_custom_call.1} parent=39 // pred_check_branch
          %263 = sbr.rel (%p261) target = $region52
        $region51: #{tpu_custom_call.1} parent=39 // pred_region
          %265 = dma.done [#allocation6], 32
        $region52: #{tpu_custom_call.1} parent=39 // pred_fallthru
          _
        // Predicated region
        $region53: #{tpu_custom_call.1} parent=39 // pred_check
          %p266 = pneg %p108
        $region54: #{tpu_custom_call.1} parent=39 // pred_check_branch
          %268 = sbr.rel (%p266) target = $region56
        $region55: #{tpu_custom_call.1} parent=39 // pred_region
          %270 = dma.done [#allocation9], 4096
        $region56: #{tpu_custom_call.1} parent=39 // pred_fallthru
          _
        %s271 = sand.u32 %s32, 1
        %s272 = scalar_lea.sflag [#allocation3], %s271
        %s273 = sand.u32 %s32, 1
        %s274 = smul.addr %s273, 256
        %s275 = scalar_lea.vmem [#allocation2], %s274
        %p276 = pneg %p45
        %p277 = pneg %p42
        %p278 = pneg %p66
        %p279 = pneg %p63
        %p280 = pneg %p87
        %p281 = pneg %p84
        %p282 = pneg %p108
        %p283 = pneg %p105
        %p284 = pneg %p129
        %p285 = pneg %p126
        %p286 = pneg %p155
        %p287 = pneg %p152
        %s288 = sand.u32 %s142, 1
        %s289 = scalar_lea.sflag [#allocation4], %s288
        %s290 = sand.u32 %s142, 1
        %s291 = smul.addr %s290, 256
        %s292 = scalar_lea.vmem [#allocation10], %s291
        %s293 = smul.u32 32, %s24
        %s294 = smul.u32 32, %s24
        %v295 = vld [vmem:[%s250] sm:$0xff]
        %v296 = vld [vmem:[%s250 + $0x8] sm:$0xff]
        %v297 = vld [vmem:[%s250 + $0x10] sm:$0xff]
        %v298 = vld [vmem:[%s250 + $0x18] sm:$0xff]
        %v299 = vld [vmem:[%s250 + $0x20] sm:$0xff]
        %v300 = vld [vmem:[%s250 + $0x28] sm:$0xff]
        %v301 = vld [vmem:[%s250 + $0x30] sm:$0xff]
        %v302 = vld [vmem:[%s250 + $0x38] sm:$0xff]
        %v303 = vld [vmem:[%s250 + $0x40] sm:$0xff]
        %v304 = vld [vmem:[%s250 + $0x48] sm:$0xff]
        %v305 = vld [vmem:[%s250 + $0x50] sm:$0xff]
        %v306 = vld [vmem:[%s250 + $0x58] sm:$0xff]
        %v307 = vld [vmem:[%s250 + $0x60] sm:$0xff]
        %v308 = vld [vmem:[%s250 + $0x68] sm:$0xff]
        %v309 = vld [vmem:[%s250 + $0x70] sm:$0xff]
        %v310 = vld [vmem:[%s250 + $0x78] sm:$0xff]
        %v311 = vld [vmem:[%s250 + $0x80] sm:$0xff]
        %v312 = vld [vmem:[%s250 + $0x88] sm:$0xff]
        %v313 = vld [vmem:[%s250 + $0x90] sm:$0xff]
        %v314 = vld [vmem:[%s250 + $0x98] sm:$0xff]
        %v315 = vld [vmem:[%s250 + $0xa0] sm:$0xff]
        %v316 = vld [vmem:[%s250 + $0xa8] sm:$0xff]
        %v317 = vld [vmem:[%s250 + $0xb0] sm:$0xff]
        %v318 = vld [vmem:[%s250 + $0xb8] sm:$0xff]
        %v319 = vld [vmem:[%s250 + $0xc0] sm:$0xff]
        %v320 = vld [vmem:[%s250 + $0xc8] sm:$0xff]
        %v321 = vld [vmem:[%s250 + $0xd0] sm:$0xff]
        %v322 = vld [vmem:[%s250 + $0xd8] sm:$0xff]
        %v323 = vld [vmem:[%s250 + $0xe0] sm:$0xff]
        %v324 = vld [vmem:[%s250 + $0xe8] sm:$0xff]
        %v325 = vld [vmem:[%s250 + $0xf0] sm:$0xff]
        %v326 = vld [vmem:[%s250 + $0xf8] sm:$0xff]
        %v327 = vld [vmem:[#allocation5] sm:$0xff]
        %v328 = vld [vmem:[#allocation5 + $0x8] sm:$0xff]
        %v329 = vld [vmem:[#allocation5 + $0x10] sm:$0xff]
        %v330 = vld [vmem:[#allocation5 + $0x18] sm:$0xff]
        %v331 = vld [vmem:[#allocation5 + $0x20] sm:$0xff]
        %v332 = vld [vmem:[#allocation5 + $0x28] sm:$0xff]
        %v333 = vld [vmem:[#allocation5 + $0x30] sm:$0xff]
        %v334 = vld [vmem:[#allocation5 + $0x38] sm:$0xff]
        %v335 = vld [vmem:[#allocation5 + $0x40] sm:$0xff]
        %v336 = vld [vmem:[#allocation5 + $0x48] sm:$0xff]
        %v337 = vld [vmem:[#allocation5 + $0x50] sm:$0xff]
        %v338 = vld [vmem:[#allocation5 + $0x58] sm:$0xff]
        %v339 = vld [vmem:[#allocation5 + $0x60] sm:$0xff]
        %v340 = vld [vmem:[#allocation5 + $0x68] sm:$0xff]
        %v341 = vld [vmem:[#allocation5 + $0x70] sm:$0xff]
        %v342 = vld [vmem:[#allocation5 + $0x78] sm:$0xff]
        %v343 = vld [vmem:[#allocation5 + $0x80] sm:$0xff]
        %v344 = vld [vmem:[#allocation5 + $0x88] sm:$0xff]
        %v345 = vld [vmem:[#allocation5 + $0x90] sm:$0xff]
        %v346 = vld [vmem:[#allocation5 + $0x98] sm:$0xff]
        %v347 = vld [vmem:[#allocation5 + $0xa0] sm:$0xff]
        %v348 = vld [vmem:[#allocation5 + $0xa8] sm:$0xff]
        %v349 = vld [vmem:[#allocation5 + $0xb0] sm:$0xff]
        %v350 = vld [vmem:[#allocation5 + $0xb8] sm:$0xff]
        %v351 = vld [vmem:[#allocation5 + $0xc0] sm:$0xff]
        %v352 = vld [vmem:[#allocation5 + $0xc8] sm:$0xff]
        %v353 = vld [vmem:[#allocation5 + $0xd0] sm:$0xff]
        %v354 = vld [vmem:[#allocation5 + $0xd8] sm:$0xff]
        %v355 = vld [vmem:[#allocation5 + $0xe0] sm:$0xff]
        %v356 = vld [vmem:[#allocation5 + $0xe8] sm:$0xff]
        %v357 = vld [vmem:[#allocation5 + $0xf0] sm:$0xff]
        %v358 = vld [vmem:[#allocation5 + $0xf8] sm:$0xff]
        %v359 = vld [vmem:[#allocation7] sm:$0x3]
        %v361 = vperm.slane %v359, 0
        %v362 = vperm.slane %v359, 1
        %365 = vmatpush.msra.mxu0 %v357
        %366 = vmatpush.msra.mxu0 %v355
        %367 = vmatpush.msra.mxu0 %v353
        %368 = vmatpush.msra.mxu0 %v351
        %369 = vmatpush.msra.mxu0 %v349
        %370 = vmatpush.msra.mxu0 %v347
        %371 = vmatpush.msra.mxu0 %v345
        %372 = vmatpush.msra.mxu0 %v343
        %373 = vmatpush.msra.mxu0 %v341
        %374 = vmatpush.msra.mxu0 %v339
        %375 = vmatpush.msra.mxu0 %v337
        %376 = vmatpush.msra.mxu0 %v335
        %377 = vmatpush.msra.mxu0 %v333
        %378 = vmatpush.msra.mxu0 %v331
        %379 = vmatpush.msra.mxu0 %v329
        %380 = vmatpush.msra.mxu0 %v327
        %381 = vmatmul.f32.gmra.mxu0 %v295
        %v382 = vpop.f32.mrf.mxu0
        %v383 = vadd.f32 %v361, %v382
        %384 = vmatmul.f32.gmra.mxu0 %v296
        %v385 = vpop.f32.mrf.mxu0
        %v386 = vadd.f32 %v361, %v385
        %387 = vmatmul.f32.gmra.mxu0 %v297
        %v388 = vpop.f32.mrf.mxu0
        %v389 = vadd.f32 %v361, %v388
        %390 = vmatmul.f32.gmra.mxu0 %v298
        %v391 = vpop.f32.mrf.mxu0
        %v392 = vadd.f32 %v361, %v391
        %393 = vmatmul.f32.gmra.mxu0 %v299
        %v394 = vpop.f32.mrf.mxu0
        %v395 = vadd.f32 %v361, %v394
        %396 = vmatmul.f32.gmra.mxu0 %v300
        %v397 = vpop.f32.mrf.mxu0
        %v398 = vadd.f32 %v361, %v397
        %399 = vmatmul.f32.gmra.mxu0 %v301
        %v400 = vpop.f32.mrf.mxu0
        %v401 = vadd.f32 %v361, %v400
        %402 = vmatmul.f32.gmra.mxu0 %v302
        %v403 = vpop.f32.mrf.mxu0
        %v404 = vadd.f32 %v361, %v403
        %405 = vmatmul.f32.gmra.mxu0 %v303
        %v406 = vpop.f32.mrf.mxu0
        %v407 = vadd.f32 %v361, %v406
        %408 = vmatmul.f32.gmra.mxu0 %v304
        %v409 = vpop.f32.mrf.mxu0
        %v410 = vadd.f32 %v361, %v409
        %411 = vmatmul.f32.gmra.mxu0 %v305
        %v412 = vpop.f32.mrf.mxu0
        %v413 = vadd.f32 %v361, %v412
        %414 = vmatmul.f32.gmra.mxu0 %v306
        %v415 = vpop.f32.mrf.mxu0
        %v416 = vadd.f32 %v361, %v415
        %417 = vmatmul.f32.gmra.mxu0 %v307
        %v418 = vpop.f32.mrf.mxu0
        %v419 = vadd.f32 %v361, %v418
        %420 = vmatmul.f32.gmra.mxu0 %v308
        %v421 = vpop.f32.mrf.mxu0
        %v422 = vadd.f32 %v361, %v421
        %423 = vmatmul.f32.gmra.mxu0 %v309
        %v424 = vpop.f32.mrf.mxu0
        %v425 = vadd.f32 %v361, %v424
        %426 = vmatmul.f32.gmra.mxu0 %v310
        %v427 = vpop.f32.mrf.mxu0
        %v428 = vadd.f32 %v361, %v427
        %429 = vmatmul.f32.gmra.mxu0 %v311
        %v430 = vpop.f32.mrf.mxu0
        %v431 = vadd.f32 %v361, %v430
        %432 = vmatmul.f32.gmra.mxu0 %v312
        %v433 = vpop.f32.mrf.mxu0
        %v434 = vadd.f32 %v361, %v433
        %435 = vmatmul.f32.gmra.mxu0 %v313
        %v436 = vpop.f32.mrf.mxu0
        %v437 = vadd.f32 %v361, %v436
        %438 = vmatmul.f32.gmra.mxu0 %v314
        %v439 = vpop.f32.mrf.mxu0
        %v440 = vadd.f32 %v361, %v439
        %441 = vmatmul.f32.gmra.mxu0 %v315
        %v442 = vpop.f32.mrf.mxu0
        %v443 = vadd.f32 %v361, %v442
        %444 = vmatmul.f32.gmra.mxu0 %v316
        %v445 = vpop.f32.mrf.mxu0
        %v446 = vadd.f32 %v361, %v445
        %447 = vmatmul.f32.gmra.mxu0 %v317
        %v448 = vpop.f32.mrf.mxu0
        %v449 = vadd.f32 %v361, %v448
        %450 = vmatmul.f32.gmra.mxu0 %v318
        %v451 = vpop.f32.mrf.mxu0
        %v452 = vadd.f32 %v361, %v451
        %453 = vmatmul.f32.gmra.mxu0 %v319
        %v454 = vpop.f32.mrf.mxu0
        %v455 = vadd.f32 %v361, %v454
        %456 = vmatmul.f32.gmra.mxu0 %v320
        %v457 = vpop.f32.mrf.mxu0
        %v458 = vadd.f32 %v361, %v457
        %459 = vmatmul.f32.gmra.mxu0 %v321
        %v460 = vpop.f32.mrf.mxu0
        %v461 = vadd.f32 %v361, %v460
        %462 = vmatmul.f32.gmra.mxu0 %v322
        %v463 = vpop.f32.mrf.mxu0
        %v464 = vadd.f32 %v361, %v463
        %465 = vmatmul.f32.gmra.mxu0 %v323
        %v466 = vpop.f32.mrf.mxu0
        %v467 = vadd.f32 %v361, %v466
        %468 = vmatmul.f32.gmra.mxu0 %v324
        %v469 = vpop.f32.mrf.mxu0
        %v470 = vadd.f32 %v361, %v469
        %471 = vmatmul.f32.gmra.mxu0 %v325
        %v472 = vpop.f32.mrf.mxu0
        %v473 = vadd.f32 %v361, %v472
        %474 = vmatmul.f32.gmra.mxu0 %v326
        %v475 = vpop.f32.mrf.mxu0
        %v476 = vadd.f32 %v361, %v475
        %477 = vdwg.mxu0
        %478 = vmatpush.msra.mxu0 %v358
        %479 = vmatpush.msra.mxu0 %v356
        %480 = vmatpush.msra.mxu0 %v354
        %481 = vmatpush.msra.mxu0 %v352
        %482 = vmatpush.msra.mxu0 %v350
        %483 = vmatpush.msra.mxu0 %v348
        %484 = vmatpush.msra.mxu0 %v346
        %485 = vmatpush.msra.mxu0 %v344
        %486 = vmatpush.msra.mxu0 %v342
        %487 = vmatpush.msra.mxu0 %v340
        %488 = vmatpush.msra.mxu0 %v338
        %489 = vmatpush.msra.mxu0 %v336
        %490 = vmatpush.msra.mxu0 %v334
        %491 = vmatpush.msra.mxu0 %v332
        %492 = vmatpush.msra.mxu0 %v330
        %493 = vmatpush.msra.mxu0 %v328
        %494 = vmatmul.f32.gmra.mxu0 %v295
        %v495 = vpop.f32.mrf.mxu0
        %v496 = vadd.f32 %v362, %v495
        %497 = vmatmul.f32.gmra.mxu0 %v296
        %v498 = vpop.f32.mrf.mxu0
        %v499 = vadd.f32 %v362, %v498
        %500 = vmatmul.f32.gmra.mxu0 %v297
        %v501 = vpop.f32.mrf.mxu0
        %v502 = vadd.f32 %v362, %v501
        %503 = vmatmul.f32.gmra.mxu0 %v298
        %v504 = vpop.f32.mrf.mxu0
        %v505 = vadd.f32 %v362, %v504
        %506 = vmatmul.f32.gmra.mxu0 %v299
        %v507 = vpop.f32.mrf.mxu0
        %v508 = vadd.f32 %v362, %v507
        %509 = vmatmul.f32.gmra.mxu0 %v300
        %v510 = vpop.f32.mrf.mxu0
        %v511 = vadd.f32 %v362, %v510
        %512 = vmatmul.f32.gmra.mxu0 %v301
        %v513 = vpop.f32.mrf.mxu0
        %v514 = vadd.f32 %v362, %v513
        %515 = vmatmul.f32.gmra.mxu0 %v302
        %v516 = vpop.f32.mrf.mxu0
        %v517 = vadd.f32 %v362, %v516
        %518 = vmatmul.f32.gmra.mxu0 %v303
        %v519 = vpop.f32.mrf.mxu0
        %v520 = vadd.f32 %v362, %v519
        %521 = vmatmul.f32.gmra.mxu0 %v304
        %v522 = vpop.f32.mrf.mxu0
        %v523 = vadd.f32 %v362, %v522
        %524 = vmatmul.f32.gmra.mxu0 %v305
        %v525 = vpop.f32.mrf.mxu0
        %v526 = vadd.f32 %v362, %v525
        %527 = vmatmul.f32.gmra.mxu0 %v306
        %v528 = vpop.f32.mrf.mxu0
        %v529 = vadd.f32 %v362, %v528
        %530 = vmatmul.f32.gmra.mxu0 %v307
        %v531 = vpop.f32.mrf.mxu0
        %v532 = vadd.f32 %v362, %v531
        %533 = vmatmul.f32.gmra.mxu0 %v308
        %v534 = vpop.f32.mrf.mxu0
        %v535 = vadd.f32 %v362, %v534
        %536 = vmatmul.f32.gmra.mxu0 %v309
        %v537 = vpop.f32.mrf.mxu0
        %v538 = vadd.f32 %v362, %v537
        %539 = vmatmul.f32.gmra.mxu0 %v310
        %v540 = vpop.f32.mrf.mxu0
        %v541 = vadd.f32 %v362, %v540
        %542 = vmatmul.f32.gmra.mxu0 %v311
        %v543 = vpop.f32.mrf.mxu0
        %v544 = vadd.f32 %v362, %v543
        %545 = vmatmul.f32.gmra.mxu0 %v312
        %v546 = vpop.f32.mrf.mxu0
        %v547 = vadd.f32 %v362, %v546
        %548 = vmatmul.f32.gmra.mxu0 %v313
        %v549 = vpop.f32.mrf.mxu0
        %v550 = vadd.f32 %v362, %v549
        %551 = vmatmul.f32.gmra.mxu0 %v314
        %v552 = vpop.f32.mrf.mxu0
        %v553 = vadd.f32 %v362, %v552
        %554 = vmatmul.f32.gmra.mxu0 %v315
        %v555 = vpop.f32.mrf.mxu0
        %v556 = vadd.f32 %v362, %v555
        %557 = vmatmul.f32.gmra.mxu0 %v316
        %v558 = vpop.f32.mrf.mxu0
        %v559 = vadd.f32 %v362, %v558
        %560 = vmatmul.f32.gmra.mxu0 %v317
        %v561 = vpop.f32.mrf.mxu0
        %v562 = vadd.f32 %v362, %v561
        %563 = vmatmul.f32.gmra.mxu0 %v318
        %v564 = vpop.f32.mrf.mxu0
        %v565 = vadd.f32 %v362, %v564
        %566 = vmatmul.f32.gmra.mxu0 %v319
        %v567 = vpop.f32.mrf.mxu0
        %v568 = vadd.f32 %v362, %v567
        %569 = vmatmul.f32.gmra.mxu0 %v320
        %v570 = vpop.f32.mrf.mxu0
        %v571 = vadd.f32 %v362, %v570
        %572 = vmatmul.f32.gmra.mxu0 %v321
        %v573 = vpop.f32.mrf.mxu0
        %v574 = vadd.f32 %v362, %v573
        %575 = vmatmul.f32.gmra.mxu0 %v322
        %v576 = vpop.f32.mrf.mxu0
        %v577 = vadd.f32 %v362, %v576
        %578 = vmatmul.f32.gmra.mxu0 %v323
        %v579 = vpop.f32.mrf.mxu0
        %v580 = vadd.f32 %v362, %v579
        %581 = vmatmul.f32.gmra.mxu0 %v324
        %v582 = vpop.f32.mrf.mxu0
        %v583 = vadd.f32 %v362, %v582
        %584 = vmatmul.f32.gmra.mxu0 %v325
        %v585 = vpop.f32.mrf.mxu0
        %v586 = vadd.f32 %v362, %v585
        %587 = vmatmul.f32.gmra.mxu0 %v326
        %v588 = vpop.f32.mrf.mxu0
        %v589 = vadd.f32 %v362, %v588
        %590 = vdwg.mxu0
        %v591 = vmax.f32 %v383, 0.0
        %v592 = vmax.f32 %v496, 0.0
        %v593 = vmax.f32 %v386, 0.0
        %v594 = vmax.f32 %v499, 0.0
        %v595 = vmax.f32 %v389, 0.0
        %v596 = vmax.f32 %v502, 0.0
        %v597 = vmax.f32 %v392, 0.0
        %v598 = vmax.f32 %v505, 0.0
        %v599 = vmax.f32 %v395, 0.0
        %v600 = vmax.f32 %v508, 0.0
        %v601 = vmax.f32 %v398, 0.0
        %v602 = vmax.f32 %v511, 0.0
        %v603 = vmax.f32 %v401, 0.0
        %v604 = vmax.f32 %v514, 0.0
        %v605 = vmax.f32 %v404, 0.0
        %v606 = vmax.f32 %v517, 0.0
        %v607 = vmax.f32 %v407, 0.0
        %v608 = vmax.f32 %v520, 0.0
        %v609 = vmax.f32 %v410, 0.0
        %v610 = vmax.f32 %v523, 0.0
        %v611 = vmax.f32 %v413, 0.0
        %v612 = vmax.f32 %v526, 0.0
        %v613 = vmax.f32 %v416, 0.0
        %v614 = vmax.f32 %v529, 0.0
        %v615 = vmax.f32 %v419, 0.0
        %v616 = vmax.f32 %v532, 0.0
        %v617 = vmax.f32 %v422, 0.0
        %v618 = vmax.f32 %v535, 0.0
        %v619 = vmax.f32 %v425, 0.0
        %v620 = vmax.f32 %v538, 0.0
        %v621 = vmax.f32 %v428, 0.0
        %v622 = vmax.f32 %v541, 0.0
        %v623 = vmax.f32 %v431, 0.0
        %v624 = vmax.f32 %v544, 0.0
        %v625 = vmax.f32 %v434, 0.0
        %v626 = vmax.f32 %v547, 0.0
        %v627 = vmax.f32 %v437, 0.0
        %v628 = vmax.f32 %v550, 0.0
        %v629 = vmax.f32 %v440, 0.0
        %v630 = vmax.f32 %v553, 0.0
        %v631 = vmax.f32 %v443, 0.0
        %v632 = vmax.f32 %v556, 0.0
        %v633 = vmax.f32 %v446, 0.0
        %v634 = vmax.f32 %v559, 0.0
        %v635 = vmax.f32 %v449, 0.0
        %v636 = vmax.f32 %v562, 0.0
        %v637 = vmax.f32 %v452, 0.0
        %v638 = vmax.f32 %v565, 0.0
        %v639 = vmax.f32 %v455, 0.0
        %v640 = vmax.f32 %v568, 0.0
        %v641 = vmax.f32 %v458, 0.0
        %v642 = vmax.f32 %v571, 0.0
        %v643 = vmax.f32 %v461, 0.0
        %v644 = vmax.f32 %v574, 0.0
        %v645 = vmax.f32 %v464, 0.0
        %v646 = vmax.f32 %v577, 0.0
        %v647 = vmax.f32 %v467, 0.0
        %v648 = vmax.f32 %v580, 0.0
        %v649 = vmax.f32 %v470, 0.0
        %v650 = vmax.f32 %v583, 0.0
        %v651 = vmax.f32 %v473, 0.0
        %v652 = vmax.f32 %v586, 0.0
        %v653 = vmax.f32 %v476, 0.0
        %v654 = vmax.f32 %v589, 0.0
        %v655 = vld [vmem:[#allocation8] sm:$0xff]
        %v656 = vld [vmem:[#allocation8 + $0x8] sm:$0xff]
        %v657 = vld [vmem:[#allocation8 + $0x10] sm:$0xff]
        %v658 = vld [vmem:[#allocation8 + $0x18] sm:$0xff]
        %v659 = vld [vmem:[#allocation8 + $0x20] sm:$0xff]
        %v660 = vld [vmem:[#allocation8 + $0x28] sm:$0xff]
        %v661 = vld [vmem:[#allocation8 + $0x30] sm:$0xff]
        %v662 = vld [vmem:[#allocation8 + $0x38] sm:$0xff]
        %v663 = vld [vmem:[#allocation8 + $0x40] sm:$0xff]
        %v664 = vld [vmem:[#allocation8 + $0x48] sm:$0xff]
        %v665 = vld [vmem:[#allocation8 + $0x50] sm:$0xff]
        %v666 = vld [vmem:[#allocation8 + $0x58] sm:$0xff]
        %v667 = vld [vmem:[#allocation8 + $0x60] sm:$0xff]
        %v668 = vld [vmem:[#allocation8 + $0x68] sm:$0xff]
        %v669 = vld [vmem:[#allocation8 + $0x70] sm:$0xff]
        %v670 = vld [vmem:[#allocation8 + $0x78] sm:$0xff]
        %v671 = vld [vmem:[#allocation8 + $0x80] sm:$0xff]
        %v672 = vld [vmem:[#allocation8 + $0x88] sm:$0xff]
        %v673 = vld [vmem:[#allocation8 + $0x90] sm:$0xff]
        %v674 = vld [vmem:[#allocation8 + $0x98] sm:$0xff]
        %v675 = vld [vmem:[#allocation8 + $0xa0] sm:$0xff]
        %v676 = vld [vmem:[#allocation8 + $0xa8] sm:$0xff]
        %v677 = vld [vmem:[#allocation8 + $0xb0] sm:$0xff]
        %v678 = vld [vmem:[#allocation8 + $0xb8] sm:$0xff]
        %v679 = vld [vmem:[#allocation8 + $0xc0] sm:$0xff]
        %v680 = vld [vmem:[#allocation8 + $0xc8] sm:$0xff]
        %v681 = vld [vmem:[#allocation8 + $0xd0] sm:$0xff]
        %v682 = vld [vmem:[#allocation8 + $0xd8] sm:$0xff]
        %v683 = vld [vmem:[#allocation8 + $0xe0] sm:$0xff]
        %v684 = vld [vmem:[#allocation8 + $0xe8] sm:$0xff]
        %v685 = vld [vmem:[#allocation8 + $0xf0] sm:$0xff]
        %v686 = vld [vmem:[#allocation8 + $0xf8] sm:$0xff]
        %v687 = vld [vmem:[%s4] sm:$0x1]
        %v689 = vperm.slane %v687, 0
        %691 = vmatpush.msra.mxu0 %v670
        %692 = vmatpush.msra.mxu0 %v669
        %693 = vmatpush.msra.mxu0 %v668
        %694 = vmatpush.msra.mxu0 %v667
        %695 = vmatpush.msra.mxu0 %v666
        %696 = vmatpush.msra.mxu0 %v665
        %697 = vmatpush.msra.mxu0 %v664
        %698 = vmatpush.msra.mxu0 %v663
        %699 = vmatpush.msra.mxu0 %v662
        %700 = vmatpush.msra.mxu0 %v661
        %701 = vmatpush.msra.mxu0 %v660
        %702 = vmatpush.msra.mxu0 %v659
        %703 = vmatpush.msra.mxu0 %v658
        %704 = vmatpush.msra.mxu0 %v657
        %705 = vmatpush.msra.mxu0 %v656
        %706 = vmatpush.msra.mxu0 %v655
        %707 = vmatmul.f32.gmra.mxu0 %v591
        %v708 = vpop.f32.mrf.mxu0
        %v709 = vadd.f32 %v689, %v708
        %710 = vmatmul.f32.gmra.mxu0 %v593
        %v711 = vpop.f32.mrf.mxu0
        %v712 = vadd.f32 %v689, %v711
        %713 = vmatmul.f32.gmra.mxu0 %v595
        %v714 = vpop.f32.mrf.mxu0
        %v715 = vadd.f32 %v689, %v714
        %716 = vmatmul.f32.gmra.mxu0 %v597
        %v717 = vpop.f32.mrf.mxu0
        %v718 = vadd.f32 %v689, %v717
        %719 = vmatmul.f32.gmra.mxu0 %v599
        %v720 = vpop.f32.mrf.mxu0
        %v721 = vadd.f32 %v689, %v720
        %722 = vmatmul.f32.gmra.mxu0 %v601
        %v723 = vpop.f32.mrf.mxu0
        %v724 = vadd.f32 %v689, %v723
        %725 = vmatmul.f32.gmra.mxu0 %v603
        %v726 = vpop.f32.mrf.mxu0
        %v727 = vadd.f32 %v689, %v726
        %728 = vmatmul.f32.gmra.mxu0 %v605
        %v729 = vpop.f32.mrf.mxu0
        %v730 = vadd.f32 %v689, %v729
        %731 = vmatmul.f32.gmra.mxu0 %v607
        %v732 = vpop.f32.mrf.mxu0
        %v733 = vadd.f32 %v689, %v732
        %734 = vmatmul.f32.gmra.mxu0 %v609
        %v735 = vpop.f32.mrf.mxu0
        %v736 = vadd.f32 %v689, %v735
        %737 = vmatmul.f32.gmra.mxu0 %v611
        %v738 = vpop.f32.mrf.mxu0
        %v739 = vadd.f32 %v689, %v738
        %740 = vmatmul.f32.gmra.mxu0 %v613
        %v741 = vpop.f32.mrf.mxu0
        %v742 = vadd.f32 %v689, %v741
        %743 = vmatmul.f32.gmra.mxu0 %v615
        %v744 = vpop.f32.mrf.mxu0
        %v745 = vadd.f32 %v689, %v744
        %746 = vmatmul.f32.gmra.mxu0 %v617
        %v747 = vpop.f32.mrf.mxu0
        %v748 = vadd.f32 %v689, %v747
        %749 = vmatmul.f32.gmra.mxu0 %v619
        %v750 = vpop.f32.mrf.mxu0
        %v751 = vadd.f32 %v689, %v750
        %752 = vmatmul.f32.gmra.mxu0 %v621
        %v753 = vpop.f32.mrf.mxu0
        %v754 = vadd.f32 %v689, %v753
        %755 = vmatmul.f32.gmra.mxu0 %v623
        %v756 = vpop.f32.mrf.mxu0
        %v757 = vadd.f32 %v689, %v756
        %758 = vmatmul.f32.gmra.mxu0 %v625
        %v759 = vpop.f32.mrf.mxu0
        %v760 = vadd.f32 %v689, %v759
        %761 = vmatmul.f32.gmra.mxu0 %v627
        %v762 = vpop.f32.mrf.mxu0
        %v763 = vadd.f32 %v689, %v762
        %764 = vmatmul.f32.gmra.mxu0 %v629
        %v765 = vpop.f32.mrf.mxu0
        %v766 = vadd.f32 %v689, %v765
        %767 = vmatmul.f32.gmra.mxu0 %v631
        %v768 = vpop.f32.mrf.mxu0
        %v769 = vadd.f32 %v689, %v768
        %770 = vmatmul.f32.gmra.mxu0 %v633
        %v771 = vpop.f32.mrf.mxu0
        %v772 = vadd.f32 %v689, %v771
        %773 = vmatmul.f32.gmra.mxu0 %v635
        %v774 = vpop.f32.mrf.mxu0
        %v775 = vadd.f32 %v689, %v774
        %776 = vmatmul.f32.gmra.mxu0 %v637
        %v777 = vpop.f32.mrf.mxu0
        %v778 = vadd.f32 %v689, %v777
        %779 = vmatmul.f32.gmra.mxu0 %v639
        %v780 = vpop.f32.mrf.mxu0
        %v781 = vadd.f32 %v689, %v780
        %782 = vmatmul.f32.gmra.mxu0 %v641
        %v783 = vpop.f32.mrf.mxu0
        %v784 = vadd.f32 %v689, %v783
        %785 = vmatmul.f32.gmra.mxu0 %v643
        %v786 = vpop.f32.mrf.mxu0
        %v787 = vadd.f32 %v689, %v786
        %788 = vmatmul.f32.gmra.mxu0 %v645
        %v789 = vpop.f32.mrf.mxu0
        %v790 = vadd.f32 %v689, %v789
        %791 = vmatmul.f32.gmra.mxu0 %v647
        %v792 = vpop.f32.mrf.mxu0
        %v793 = vadd.f32 %v689, %v792
        %794 = vmatmul.f32.gmra.mxu0 %v649
        %v795 = vpop.f32.mrf.mxu0
        %v796 = vadd.f32 %v689, %v795
        %797 = vmatmul.f32.gmra.mxu0 %v651
        %v798 = vpop.f32.mrf.mxu0
        %v799 = vadd.f32 %v689, %v798
        %800 = vmatmul.f32.gmra.mxu0 %v653
        %v801 = vpop.f32.mrf.mxu0
        %v802 = vadd.f32 %v689, %v801
        %803 = vdwg.mxu0
        %804 = vmatpush.msra.mxu0 %v686
        %805 = vmatpush.msra.mxu0 %v685
        %806 = vmatpush.msra.mxu0 %v684
        %807 = vmatpush.msra.mxu0 %v683
        %808 = vmatpush.msra.mxu0 %v682
        %809 = vmatpush.msra.mxu0 %v681
        %810 = vmatpush.msra.mxu0 %v680
        %811 = vmatpush.msra.mxu0 %v679
        %812 = vmatpush.msra.mxu0 %v678
        %813 = vmatpush.msra.mxu0 %v677
        %814 = vmatpush.msra.mxu0 %v676
        %815 = vmatpush.msra.mxu0 %v675
        %816 = vmatpush.msra.mxu0 %v674
        %817 = vmatpush.msra.mxu0 %v673
        %818 = vmatpush.msra.mxu0 %v672
        %819 = vmatpush.msra.mxu0 %v671
        %820 = vmatmul.f32.gmra.mxu0 %v592
        %v821 = vpop.f32.mrf.mxu0
        %v822 = vadd.f32 %v709, %v821
        %823 = vmatmul.f32.gmra.mxu0 %v594
        %v824 = vpop.f32.mrf.mxu0
        %v825 = vadd.f32 %v712, %v824
        %826 = vmatmul.f32.gmra.mxu0 %v596
        %v827 = vpop.f32.mrf.mxu0
        %v828 = vadd.f32 %v715, %v827
        %829 = vmatmul.f32.gmra.mxu0 %v598
        %v830 = vpop.f32.mrf.mxu0
        %v831 = vadd.f32 %v718, %v830
        %832 = vmatmul.f32.gmra.mxu0 %v600
        %v833 = vpop.f32.mrf.mxu0
        %v834 = vadd.f32 %v721, %v833
        %835 = vmatmul.f32.gmra.mxu0 %v602
        %v836 = vpop.f32.mrf.mxu0
        %v837 = vadd.f32 %v724, %v836
        %838 = vmatmul.f32.gmra.mxu0 %v604
        %v839 = vpop.f32.mrf.mxu0
        %v840 = vadd.f32 %v727, %v839
        %841 = vmatmul.f32.gmra.mxu0 %v606
        %v842 = vpop.f32.mrf.mxu0
        %v843 = vadd.f32 %v730, %v842
        %844 = vmatmul.f32.gmra.mxu0 %v608
        %v845 = vpop.f32.mrf.mxu0
        %v846 = vadd.f32 %v733, %v845
        %847 = vmatmul.f32.gmra.mxu0 %v610
        %v848 = vpop.f32.mrf.mxu0
        %v849 = vadd.f32 %v736, %v848
        %850 = vmatmul.f32.gmra.mxu0 %v612
        %v851 = vpop.f32.mrf.mxu0
        %v852 = vadd.f32 %v739, %v851
        %853 = vmatmul.f32.gmra.mxu0 %v614
        %v854 = vpop.f32.mrf.mxu0
        %v855 = vadd.f32 %v742, %v854
        %856 = vmatmul.f32.gmra.mxu0 %v616
        %v857 = vpop.f32.mrf.mxu0
        %v858 = vadd.f32 %v745, %v857
        %859 = vmatmul.f32.gmra.mxu0 %v618
        %v860 = vpop.f32.mrf.mxu0
        %v861 = vadd.f32 %v748, %v860
        %862 = vmatmul.f32.gmra.mxu0 %v620
        %v863 = vpop.f32.mrf.mxu0
        %v864 = vadd.f32 %v751, %v863
        %865 = vmatmul.f32.gmra.mxu0 %v622
        %v866 = vpop.f32.mrf.mxu0
        %v867 = vadd.f32 %v754, %v866
        %868 = vmatmul.f32.gmra.mxu0 %v624
        %v869 = vpop.f32.mrf.mxu0
        %v870 = vadd.f32 %v757, %v869
        %871 = vmatmul.f32.gmra.mxu0 %v626
        %v872 = vpop.f32.mrf.mxu0
        %v873 = vadd.f32 %v760, %v872
        %874 = vmatmul.f32.gmra.mxu0 %v628
        %v875 = vpop.f32.mrf.mxu0
        %v876 = vadd.f32 %v763, %v875
        %877 = vmatmul.f32.gmra.mxu0 %v630
        %v878 = vpop.f32.mrf.mxu0
        %v879 = vadd.f32 %v766, %v878
        %880 = vmatmul.f32.gmra.mxu0 %v632
        %v881 = vpop.f32.mrf.mxu0
        %v882 = vadd.f32 %v769, %v881
        %883 = vmatmul.f32.gmra.mxu0 %v634
        %v884 = vpop.f32.mrf.mxu0
        %v885 = vadd.f32 %v772, %v884
        %886 = vmatmul.f32.gmra.mxu0 %v636
        %v887 = vpop.f32.mrf.mxu0
        %v888 = vadd.f32 %v775, %v887
        %889 = vmatmul.f32.gmra.mxu0 %v638
        %v890 = vpop.f32.mrf.mxu0
        %v891 = vadd.f32 %v778, %v890
        %892 = vmatmul.f32.gmra.mxu0 %v640
        %v893 = vpop.f32.mrf.mxu0
        %v894 = vadd.f32 %v781, %v893
        %895 = vmatmul.f32.gmra.mxu0 %v642
        %v896 = vpop.f32.mrf.mxu0
        %v897 = vadd.f32 %v784, %v896
        %898 = vmatmul.f32.gmra.mxu0 %v644
        %v899 = vpop.f32.mrf.mxu0
        %v900 = vadd.f32 %v787, %v899
        %901 = vmatmul.f32.gmra.mxu0 %v646
        %v902 = vpop.f32.mrf.mxu0
        %v903 = vadd.f32 %v790, %v902
        %904 = vmatmul.f32.gmra.mxu0 %v648
        %v905 = vpop.f32.mrf.mxu0
        %v906 = vadd.f32 %v793, %v905
        %907 = vmatmul.f32.gmra.mxu0 %v650
        %v908 = vpop.f32.mrf.mxu0
        %v909 = vadd.f32 %v796, %v908
        %910 = vmatmul.f32.gmra.mxu0 %v652
        %v911 = vpop.f32.mrf.mxu0
        %v912 = vadd.f32 %v799, %v911
        %913 = vmatmul.f32.gmra.mxu0 %v654
        %v914 = vpop.f32.mrf.mxu0
        %v915 = vadd.f32 %v802, %v914
        %916 = vdwg.mxu0
        %v917 = vadd.f32 %v822, %v295
        %v918 = vadd.f32 %v825, %v296
        %v919 = vadd.f32 %v828, %v297
        %v920 = vadd.f32 %v831, %v298
        %v921 = vadd.f32 %v834, %v299
        %v922 = vadd.f32 %v837, %v300
        %v923 = vadd.f32 %v840, %v301
        %v924 = vadd.f32 %v843, %v302
        %v925 = vadd.f32 %v846, %v303
        %v926 = vadd.f32 %v849, %v304
        %v927 = vadd.f32 %v852, %v305
        %v928 = vadd.f32 %v855, %v306
        %v929 = vadd.f32 %v858, %v307
        %v930 = vadd.f32 %v861, %v308
        %v931 = vadd.f32 %v864, %v309
        %v932 = vadd.f32 %v867, %v310
        %v933 = vadd.f32 %v870, %v311
        %v934 = vadd.f32 %v873, %v312
        %v935 = vadd.f32 %v876, %v313
        %v936 = vadd.f32 %v879, %v314
        %v937 = vadd.f32 %v882, %v315
        %v938 = vadd.f32 %v885, %v316
        %v939 = vadd.f32 %v888, %v317
        %v940 = vadd.f32 %v891, %v318
        %v941 = vadd.f32 %v894, %v319
        %v942 = vadd.f32 %v897, %v320
        %v943 = vadd.f32 %v900, %v321
        %v944 = vadd.f32 %v903, %v322
        %v945 = vadd.f32 %v906, %v323
        %v946 = vadd.f32 %v909, %v324
        %v947 = vadd.f32 %v912, %v325
        %v948 = vadd.f32 %v915, %v326
        %v949 = vmax.f32 %v917, 0.0
        %v950 = vmax.f32 %v918, 0.0
        %v951 = vmax.f32 %v919, 0.0
        %v952 = vmax.f32 %v920, 0.0
        %v953 = vmax.f32 %v921, 0.0
        %v954 = vmax.f32 %v922, 0.0
        %v955 = vmax.f32 %v923, 0.0
        %v956 = vmax.f32 %v924, 0.0
        %v957 = vmax.f32 %v925, 0.0
        %v958 = vmax.f32 %v926, 0.0
        %v959 = vmax.f32 %v927, 0.0
        %v960 = vmax.f32 %v928, 0.0
        %v961 = vmax.f32 %v929, 0.0
        %v962 = vmax.f32 %v930, 0.0
        %v963 = vmax.f32 %v931, 0.0
        %v964 = vmax.f32 %v932, 0.0
        %v965 = vmax.f32 %v933, 0.0
        %v966 = vmax.f32 %v934, 0.0
        %v967 = vmax.f32 %v935, 0.0
        %v968 = vmax.f32 %v936, 0.0
        %v969 = vmax.f32 %v937, 0.0
        %v970 = vmax.f32 %v938, 0.0
        %v971 = vmax.f32 %v939, 0.0
        %v972 = vmax.f32 %v940, 0.0
        %v973 = vmax.f32 %v941, 0.0
        %v974 = vmax.f32 %v942, 0.0
        %v975 = vmax.f32 %v943, 0.0
        %v976 = vmax.f32 %v944, 0.0
        %v977 = vmax.f32 %v945, 0.0
        %v978 = vmax.f32 %v946, 0.0
        %v979 = vmax.f32 %v947, 0.0
        %v980 = vmax.f32 %v948, 0.0
        %981 = vst [vmem:[%s292] sm:$0xff] %v949
        %982 = vst [vmem:[%s292 + $0x8] sm:$0xff] %v950
        %983 = vst [vmem:[%s292 + $0x10] sm:$0xff] %v951
        %984 = vst [vmem:[%s292 + $0x18] sm:$0xff] %v952
        %985 = vst [vmem:[%s292 + $0x20] sm:$0xff] %v953
        %986 = vst [vmem:[%s292 + $0x28] sm:$0xff] %v954
        %987 = vst [vmem:[%s292 + $0x30] sm:$0xff] %v955
        %988 = vst [vmem:[%s292 + $0x38] sm:$0xff] %v956
        %989 = vst [vmem:[%s292 + $0x40] sm:$0xff] %v957
        %990 = vst [vmem:[%s292 + $0x48] sm:$0xff] %v958
        %991 = vst [vmem:[%s292 + $0x50] sm:$0xff] %v959
        %992 = vst [vmem:[%s292 + $0x58] sm:$0xff] %v960
        %993 = vst [vmem:[%s292 + $0x60] sm:$0xff] %v961
        %994 = vst [vmem:[%s292 + $0x68] sm:$0xff] %v962
        %995 = vst [vmem:[%s292 + $0x70] sm:$0xff] %v963
        %996 = vst [vmem:[%s292 + $0x78] sm:$0xff] %v964
        %997 = vst [vmem:[%s292 + $0x80] sm:$0xff] %v965
        %998 = vst [vmem:[%s292 + $0x88] sm:$0xff] %v966
        %999 = vst [vmem:[%s292 + $0x90] sm:$0xff] %v967
        %1000 = vst [vmem:[%s292 + $0x98] sm:$0xff] %v968
        %1001 = vst [vmem:[%s292 + $0xa0] sm:$0xff] %v969
        %1002 = vst [vmem:[%s292 + $0xa8] sm:$0xff] %v970
        %1003 = vst [vmem:[%s292 + $0xb0] sm:$0xff] %v971
        %1004 = vst [vmem:[%s292 + $0xb8] sm:$0xff] %v972
        %1005 = vst [vmem:[%s292 + $0xc0] sm:$0xff] %v973
        %1006 = vst [vmem:[%s292 + $0xc8] sm:$0xff] %v974
        %1007 = vst [vmem:[%s292 + $0xd0] sm:$0xff] %v975
        %1008 = vst [vmem:[%s292 + $0xd8] sm:$0xff] %v976
        %1009 = vst [vmem:[%s292 + $0xe0] sm:$0xff] %v977
        %1010 = vst [vmem:[%s292 + $0xe8] sm:$0xff] %v978
        %1011 = vst [vmem:[%s292 + $0xf0] sm:$0xff] %v979
        %1012 = vst [vmem:[%s292 + $0xf8] sm:$0xff] %v980
        %s1013 = sand.u32 %s142, 1
        %s1014 = scalar_lea.sflag [#allocation4], %s1013
        %s1015 = sand.u32 %s142, 1
        %s1016 = smul.addr %s1015, 256
        %s1017 = scalar_lea.vmem [#allocation10], %s1016
        // Predicated region
        $region57: #{tpu_custom_call.1} parent=39 // pred_check
          %p1018 = pneg %p152
        $region58: #{tpu_custom_call.1} parent=39 // pred_check_branch
          %1020 = sbr.rel (%p1018) target = $region60
        $region59: #{tpu_custom_call.1} parent=39 // pred_region
          %s1021 = smul.u32 32, %s24
          %1023 = vsyncadd %s1014, 0
          %s1024 = smul.addr %s1021, 8
          %s1025 = scalar_lea.hbm %s5, %s1024
          %s1026 = sshll.u32 %s1017, 4
          %s1027 = int_to_ptr.vmem [resolvable:$true] %s1026
          %s1028 = sshll.u32 %s1025, 4
          %s1029 = int_to_ptr.hbm [resolvable:$true] %s1028
          %1034 = dma.vmem_to_hbm [thread:$0]  %s1027, 4096, %s1029, %s1014, 128, 128, 8
        $region60: #{tpu_custom_call.1} parent=39 // pred_fallthru
          _
      $region40: #{tpu_custom_call.1} parent=5 // pred_fallthru
        _
      %p1035 = scmp.le.s32.totalorder 2, %s19
      // Predicated region
      $region61: #{tpu_custom_call.1} parent=5 // pred_check
        %p1036 = pneg %p1035
      $region62: #{tpu_custom_call.1} parent=5 // pred_check_branch
        %1038 = sbr.rel (%p1036) target = $region64
      $region63: #{tpu_custom_call.1} parent=5 // pred_region
        %s1039 = ssub.s32 %s19, 2
        // Predicated region
        $region65: #{tpu_custom_call.1} parent=63 // pred_check
          %p1040 = pneg %p158
        $region66: #{tpu_custom_call.1} parent=63 // pred_check_branch
          %1042 = sbr.rel (%p1040) target = $region68
        $region67: #{tpu_custom_call.1} parent=63 // pred_region
          %s1043 = sand.u32 %s143, 1
          %s1044 = scalar_lea.sflag [#allocation4], %s1043
          %s1045 = sand.u32 %s143, 1
          %s1046 = smul.addr %s1045, 256
          %s1047 = scalar_lea.vmem [#allocation10], %s1046
          %1049 = dma.done %s1044, 4096
        $region68: #{tpu_custom_call.1} parent=63 // pred_fallthru
          _
      $region64: #{tpu_custom_call.1} parent=5 // pred_fallthru
        _
    $region6: #{tpu_custom_call.1} parent=1 // loop_footer
      %s23 = sadd.s32 1, %s19
    $region7: #{tpu_custom_call.1} parent=1 // loop_footer_branch
      %18 = sbr.rel target = $region3
    $region8: #{tpu_custom_call.1} parent=1 // loop_exit
      _
    %1050 = vsyncpa [#allocation3], 1
    %s1051 = scalar_lea.sflag [#allocation3], 1
    %1052 = vsyncpa %s1051, 1
    %1053 = vsyncpa [#allocation6], 1
    %1054 = vsyncpa [#allocation9], 1
    %1055 = vsyncpa [#allocation4], 1
    %s1056 = scalar_lea.sflag [#allocation4], 1
    %1057 = vsyncpa %s1056, 1

// kernel: tpu_custom_call.1
$region0: #{tpu_custom_call.1}
  #allocation0 [shape = 'u32[]', space=smem, size = 0x4, offset = 0x4, fixed_abs, tag = 'smem constant byte address 0x4 - core index']
  #allocation1 [shape = 'u32[72,128]{1,0:T(1,128)}', space=vmem, size = 0x9000, scoped, tag = 'internal scratch']
  %s0 = inlined_call_operand.hbm [shape: f32[512,128], index: 0, kind: input, shape index: {}]
  %s1 = inlined_call_operand.hbm [shape: f32[128,256], index: 1, kind: input, shape index: {}]
  %s2 = inlined_call_operand.hbm [shape: f32[1,256], index: 2, kind: input, shape index: {}]
  %s3 = inlined_call_operand.hbm [shape: f32[256,128], index: 3, kind: input, shape index: {}]
  %s4 = inlined_call_operand.vmem [shape: f32[1,128], index: 4, kind: input, shape index: {}]
  %s5 = inlined_call_operand.hbm [shape: f32[512,128], index: 5, kind: output, shape index: {}]
  %s6 = sld [smem:[#allocation0]]
  $region69: #{tpu_custom_call.1} parent=0
    _
  %s8 = ssub.s32 1, %s6
  %s9 = scalar_select 0, %s8, %s6
  $region1: #{tpu_custom_call.1} parent=0
    #allocation2 [shape = 'u8[262144]{0}', space=vmem, size = 0x40000, scoped, tag = 'input window, operand 0']
    #allocation3 [shape = 's32[2]{0}', space=sflag, size = 0x8, scoped, tag = 'scoped memory for tpu_custom_call.1']
    #allocation4 [shape = 's32[2]{0}', space=sflag, size = 0x8, scoped, tag = 'scoped memory for tpu_custom_call.1']
    #allocation5 [shape = 'u8[131072]{0}', space=vmem, size = 0x20000, scoped, tag = 'input window, operand 1, single buffered']
    #allocation6 [shape = 's32[1]{0}', space=sflag, size = 0x4, scoped, tag = 'scoped memory for tpu_custom_call.1']
    #allocation7 [shape = 'u8[1024]{0}', space=vmem, size = 0x400, scoped, tag = 'input window, operand 2, single buffered']
    #allocation8 [shape = 'u8[131072]{0}', space=vmem, size = 0x20000, scoped, tag = 'input window, operand 3, single buffered']
    #allocation9 [shape = 's32[1]{0}', space=sflag, size = 0x4, scoped, tag = 'scoped memory for tpu_custom_call.1']
    #allocation10 [shape = 'u8[262144]{0}', space=vmem, size = 0x40000, scoped, tag = 'output window, operand 0']
    %10 = vsyncpa [#allocation3], 0
    %s11 = scalar_lea.sflag [#allocation3], 1
    %12 = vsyncpa %s11, 0
    %13 = vsyncpa [#allocation6], 0
    %14 = vsyncpa [#allocation9], 0
    %15 = vsyncpa [#allocation4], 0
    %s16 = scalar_lea.sflag [#allocation4], 1
    %17 = vsyncpa %s16, 0
    loop: start=0, step=1, limit=4
    $region2: #{tpu_custom_call.1} parent=1 // loop_pre_header
      _
    $region3: #{tpu_custom_call.1} parent=1 // loop_header
      %s19 = sphi 0, %s23
      %p20 = scmp.ge.s32.totalorder %s19, 4
      %s29 = sphi 0, %s31
      %s32 = sphi 0, %s29
      %s33 = sphi 0, %s32
      %s49 = sphi 0, %s33
      %s53 = sphi 0, %s53
      %s55 = sphi 0, %s53
      %s56 = sphi 0, %s55
      %s70 = sphi 0, %s56
      %s74 = sphi 0, %s74
      %s76 = sphi 0, %s74
      %s77 = sphi 0, %s76
      %s91 = sphi 0, %s77
      %s95 = sphi 0, %s95
      %s97 = sphi 0, %s95
      %s98 = sphi 0, %s97
      %s112 = sphi 0, %s98
      %s116 = sphi 0, %s116
      %s118 = sphi 0, %s116
      %s119 = sphi 0, %s118
      %s133 = sphi 0, %s119
      %s139 = sphi 0, %s141
      %s142 = sphi 0, %s139
      %s143 = sphi 0, %s142
      %s159 = sphi 0, %s143
    $region4: #{tpu_custom_call.1} parent=1 // loop_header_branch
      %22 = sbr.rel (%p20) target = $region8
    $region5: #{tpu_custom_call.1} parent=1 // loop_body
      %s24 = ssub.s32 %s19, 1
      %s25 = ssub.s32 %s19, 2
      %s26 = sadd.s32 %s19, 1
      %s27 = ssub.s32 %s19, %s26
      %p28 = scmp.eq.s32.totalorder %s27, 0
      %s30 = sadd.s32 %s29, 1
      %s31 = scalar_select %p28, %s29, %s30
      %p34 = pneg %p28
      %p35 = scmp.eq.s32.totalorder %s19, 1
      %p36 = por %p34, %p35
      %p37 = scmp.ne.s32.totalorder %s29, %s32
      %p38 = scmp.eq.s32.totalorder %s19, 0
      %p39 = por %p37, %p38
      %p40 = scmp.ne.s32.totalorder %s29, %s32
      %p41 = scmp.eq.s32.totalorder %s24, 1
      %p42 = por %p40, %p41
      %p43 = scmp.ne.s32.totalorder %s32, %s33
      %p44 = scmp.eq.s32.totalorder %s24, 0
      %p45 = por %p43, %p44
      %p46 = scmp.ne.s32.totalorder %s32, %s33
      %p47 = scmp.eq.s32.totalorder %s25, 1
      %p48 = por %p46, %p47
      %p50 = scmp.ne.s32.totalorder %s33, %s49
      %p51 = scmp.eq.s32.totalorder %s25, 0
      %p52 = por %p50, %p51
      %s54 = sadd.s32 %s53, 1
      %p57 = scmp.eq.s32.totalorder %s19, 1
      %p58 = scmp.ne.s32.totalorder %s53, %s55
      %p59 = scmp.eq.s32.totalorder %s19, 0
      %p60 = por %p58, %p59
      %p61 = scmp.ne.s32.totalorder %s53, %s55
      %p62 = scmp.eq.s32.totalorder %s24, 1
      %p63 = por %p61, %p62
      %p64 = scmp.ne.s32.totalorder %s55, %s56
      %p65 = scmp.eq.s32.totalorder %s24, 0
      %p66 = por %p64, %p65
      %p67 = scmp.ne.s32.totalorder %s55, %s56
      %p68 = scmp.eq.s32.totalorder %s25, 1
      %p69 = por %p67, %p68
      %p71 = scmp.ne.s32.totalorder %s56, %s70
      %p72 = scmp.eq.s32.totalorder %s25, 0
      %p73 = por %p71, %p72
      %s75 = sadd.s32 %s74, 1
      %p78 = scmp.eq.s32.totalorder %s19, 1
      %p79 = scmp.ne.s32.totalorder %s74, %s76
      %p80 = scmp.eq.s32.totalorder %s19, 0
      %p81 = por %p79, %p80
      %p82 = scmp.ne.s32.totalorder %s74, %s76
      %p83 = scmp.eq.s32.totalorder %s24, 1
      %p84 = por %p82, %p83
      %p85 = scmp.ne.s32.totalorder %s76, %s77
      %p86 = scmp.eq.s32.totalorder %s24, 0
      %p87 = por %p85, %p86
      %p88 = scmp.ne.s32.totalorder %s76, %s77
      %p89 = scmp.eq.s32.totalorder %s25, 1
      %p90 = por %p88, %p89
      %p92 = scmp.ne.s32.totalorder %s77, %s91
      %p93 = scmp.eq.s32.totalorder %s25, 0
      %p94 = por %p92, %p93
      %s96 = sadd.s32 %s95, 1
      %p99 = scmp.eq.s32.totalorder %s19, 1
      %p100 = scmp.ne.s32.totalorder %s95, %s97
      %p101 = scmp.eq.s32.totalorder %s19, 0
      %p102 = por %p100, %p101
      %p103 = scmp.ne.s32.totalorder %s95, %s97
      %p104 = scmp.eq.s32.totalorder %s24, 1
      %p105 = por %p103, %p104
      %p106 = scmp.ne.s32.totalorder %s97, %s98
      %p107 = scmp.eq.s32.totalorder %s24, 0
      %p108 = por %p106, %p107
      %p109 = scmp.ne.s32.totalorder %s97, %s98
      %p110 = scmp.eq.s32.totalorder %s25, 1
      %p111 = por %p109, %p110
      %p113 = scmp.ne.s32.totalorder %s98, %s112
      %p114 = scmp.eq.s32.totalorder %s25, 0
      %p115 = por %p113, %p114
      %s117 = sadd.s32 %s116, 1
      %p120 = scmp.eq.s32.totalorder %s19, 1
      %p121 = scmp.ne.s32.totalorder %s116, %s118
      %p122 = scmp.eq.s32.totalorder %s19, 0
      %p123 = por %p121, %p122
      %p124 = scmp.ne.s32.totalorder %s116, %s118
      %p125 = scmp.eq.s32.totalorder %s24, 1
      %p126 = por %p124, %p125
      %p127 = scmp.ne.s32.totalorder %s118, %s119
      %p128 = scmp.eq.s32.totalorder %s24, 0
      %p129 = por %p127, %p128
      %p130 = scmp.ne.s32.totalorder %s118, %s119
      %p131 = scmp.eq.s32.totalorder %s25, 1
      %p132 = por %p130, %p131
      %p134 = scmp.ne.s32.totalorder %s119, %s133
      %p135 = scmp.eq.s32.totalorder %s25, 0
      %p136 = por %p134, %p135
      %s137 = ssub.s32 %s19, %s26
      %p138 = scmp.eq.s32.totalorder %s137, 0
      %s140 = sadd.s32 %s139, 1
      %s141 = scalar_select %p138, %s139, %s140
      %p144 = pneg %p138
      %p145 = scmp.eq.s32.totalorder %s19, 1
      %p146 = por %p144, %p145
      %p147 = scmp.ne.s32.totalorder %s139, %s142
      %p148 = scmp.eq.s32.totalorder %s19, 0
      %p149 = por %p147, %p148
      %p150 = scmp.ne.s32.totalorder %s139, %s142
      %p151 = scmp.eq.s32.totalorder %s24, 1
      %p152 = por %p150, %p151
      %p153 = scmp.ne.s32.totalorder %s142, %s143
      %p154 = scmp.eq.s32.totalorder %s24, 0
      %p155 = por %p153, %p154
      %p156 = scmp.ne.s32.totalorder %s142, %s143
      %p157 = scmp.eq.s32.totalorder %s25, 1
      %p158 = por %p156, %p157
      %p160 = scmp.ne.s32.totalorder %s143, %s159
      %p161 = scmp.eq.s32.totalorder %s25, 0
      %p162 = por %p160, %p161
      %p163 = scmp.le.s32.totalorder 1, %s19
      %p164 = scmp.lt.s32.totalorder %s19, 3
      %p165 = pnand %p163, %p164
      %p166 = pneg %p165
      // Predicated region
      $region9: #{tpu_custom_call.1} parent=5 // pred_check
        _
      $region10: #{tpu_custom_call.1} parent=5 // pred_check_branch
        %168 = sbr.rel (%p165) target = $region12
      $region11: #{tpu_custom_call.1} parent=5 // pred_region
        %s169 = ssub.s32 %s19, 1
        // Predicated region
        $region13: #{tpu_custom_call.1} parent=11 // pred_check
          %p170 = pneg %p66
        $region14: #{tpu_custom_call.1} parent=11 // pred_check_branch
          %172 = sbr.rel (%p170) target = $region16
        $region15: #{tpu_custom_call.1} parent=11 // pred_region
          %174 = vsyncadd [#allocation6], 0
          %s175 = sshll.u32 %s1, 4
          %s176 = int_to_ptr.hbm [resolvable:$true] %s175
          %s177 = sshll.u32 [#allocation5], 4
          %s178 = int_to_ptr.vmem [resolvable:$true] %s177
          %183 = dma.hbm_to_vmem [thread:$0]  %s176, 4096, %s178, [#allocation6], 256, 256, 16
        $region16: #{tpu_custom_call.1} parent=11 // pred_fallthru
          _
        // Predicated region
        $region17: #{tpu_custom_call.1} parent=11 // pred_check
          %p184 = pneg %p87
        $region18: #{tpu_custom_call.1} parent=11 // pred_check_branch
          %186 = sbr.rel (%p184) target = $region20
        $region19: #{tpu_custom_call.1} parent=11 // pred_region
          %188 = vsyncadd [#allocation6], 0
          %s190 = sshll.u32 %s2, 4
          %s191 = int_to_ptr.hbm [resolvable:$true] %s190
          %s192 = sshll.u32 [#allocation7], 4
          %s193 = int_to_ptr.vmem [resolvable:$true] %s192
          %195 = dma.hbm_to_vmem [thread:$0]  %s191, 32, %s193, [#allocation6]
        $region20: #{tpu_custom_call.1} parent=11 // pred_fallthru
          _
        // Predicated region
        $region21: #{tpu_custom_call.1} parent=11 // pred_check
          %p196 = pneg %p108
        $region22: #{tpu_custom_call.1} parent=11 // pred_check_branch
          %198 = sbr.rel (%p196) target = $region24
        $region23: #{tpu_custom_call.1} parent=11 // pred_region
          %200 = vsyncadd [#allocation9], 0
          %s201 = sshll.u32 %s3, 4
          %s202 = int_to_ptr.hbm [resolvable:$true] %s201
          %s203 = sshll.u32 [#allocation8], 4
          %s204 = int_to_ptr.vmem [resolvable:$true] %s203
          %209 = dma.hbm_to_vmem [thread:$0]  %s202, 4096, %s204, [#allocation9], 128, 128, 8
        $region24: #{tpu_custom_call.1} parent=11 // pred_fallthru
          _
        // Predicated region
        $region25: #{tpu_custom_call.1} parent=11 // pred_check
          %p210 = pneg %p129
        $region26: #{tpu_custom_call.1} parent=11 // pred_check_branch
          %212 = sbr.rel (%p210) target = $region28
        $region27: #{tpu_custom_call.1} parent=11 // pred_region
          _
        $region28: #{tpu_custom_call.1} parent=11 // pred_fallthru
          _
      $region12: #{tpu_custom_call.1} parent=5 // pred_fallthru
        _
      %p213 = scmp.lt.s32.totalorder %s19, 2
      // Predicated region
      $region29: #{tpu_custom_call.1} parent=5 // pred_check
        %p214 = pneg %p213
      $region30: #{tpu_custom_call.1} parent=5 // pred_check_branch
        %216 = sbr.rel (%p214) target = $region32
      $region31: #{tpu_custom_call.1} parent=5 // pred_region
        // Predicated region
        $region33: #{tpu_custom_call.1} parent=31 // pred_check
          %p217 = pneg %p39
        $region34: #{tpu_custom_call.1} parent=31 // pred_check_branch
          %219 = sbr.rel (%p217) target = $region36
        $region35: #{tpu_custom_call.1} parent=31 // pred_region
          %s220 = sand.u32 %s29, 1
          %s221 = scalar_lea.sflag [#allocation3], %s220
          %s222 = sand.u32 %s29, 1
          %s223 = smul.addr %s222, 256
          %s224 = scalar_lea.vmem [#allocation2], %s223
          %s225 = smul.u32 32, %s19
          %227 = vsyncadd %s221, 0
          %s228 = smul.addr %s225, 8
          %s229 = scalar_lea.hbm %s0, %s228
          %s230 = sshll.u32 %s229, 4
          %s231 = int_to_ptr.hbm [resolvable:$true] %s230
          %s232 = sshll.u32 %s224, 4
          %s233 = int_to_ptr.vmem [resolvable:$true] %s232
          %238 = dma.hbm_to_vmem [thread:$0]  %s231, 4096, %s233, %s221, 128, 128, 8
        $region36: #{tpu_custom_call.1} parent=31 // pred_fallthru
          _
      $region32: #{tpu_custom_call.1} parent=5 // pred_fallthru
        _
      %p239 = scmp.le.s32.totalorder 1, %s19
      %p240 = scmp.lt.s32.totalorder %s19, 3
      %p241 = pnand %p239, %p240
      %p242 = pneg %p241
      // Predicated region
      $region37: #{tpu_custom_call.1} parent=5 // pred_check
        _
      $region38: #{tpu_custom_call.1} parent=5 // pred_check_branch
        %244 = sbr.rel (%p241) target = $region40
      $region39: #{tpu_custom_call.1} parent=5 // pred_region
        %s245 = ssub.s32 %s19, 1
        %s246 = sand.u32 %s32, 1
        %s247 = scalar_lea.sflag [#allocation3], %s246
        %s248 = sand.u32 %s32, 1
        %s249 = smul.addr %s248, 256
        %s250 = scalar_lea.vmem [#allocation2], %s249
        // Predicated region
        $region41: #{tpu_custom_call.1} parent=39 // pred_check
          %p251 = pneg %p45
        $region42: #{tpu_custom_call.1} parent=39 // pred_check_branch
          %253 = sbr.rel (%p251) target = $region44
        $region43: #{tpu_custom_call.1} parent=39 // pred_region
          %255 = dma.done %s247, 4096
        $region44: #{tpu_custom_call.1} parent=39 // pred_fallthru
          _
        // Predicated region
        $region45: #{tpu_custom_call.1} parent=39 // pred_check
          %p256 = pneg %p66
        $region46: #{tpu_custom_call.1} parent=39 // pred_check_branch
          %258 = sbr.rel (%p256) target = $region48
        $region47: #{tpu_custom_call.1} parent=39 // pred_region
          %260 = dma.done [#allocation6], 4096
        $region48: #{tpu_custom_call.1} parent=39 // pred_fallthru
          _
        // Predicated region
        $region49: #{tpu_custom_call.1} parent=39 // pred_check
          %p261 = pneg %p87
        $region50: #{tpu_custom_call.1} parent=39 // pred_check_branch
          %263 = sbr.rel (%p261) target = $region52
        $region51: #{tpu_custom_call.1} parent=39 // pred_region
          %265 = dma.done [#allocation6], 32
        $region52: #{tpu_custom_call.1} parent=39 // pred_fallthru
          _
        // Predicated region
        $region53: #{tpu_custom_call.1} parent=39 // pred_check
          %p266 = pneg %p108
        $region54: #{tpu_custom_call.1} parent=39 // pred_check_branch
          %268 = sbr.rel (%p266) target = $region56
        $region55: #{tpu_custom_call.1} parent=39 // pred_region
          %270 = dma.done [#allocation9], 4096
        $region56: #{tpu_custom_call.1} parent=39 // pred_fallthru
          _
        %s271 = sand.u32 %s32, 1
        %s272 = scalar_lea.sflag [#allocation3], %s271
        %s273 = sand.u32 %s32, 1
        %s274 = smul.addr %s273, 256
        %s275 = scalar_lea.vmem [#allocation2], %s274
        %p276 = pneg %p45
        %p277 = pneg %p42
        %p278 = pneg %p66
        %p279 = pneg %p63
        %p280 = pneg %p87
        %p281 = pneg %p84
        %p282 = pneg %p108
        %p283 = pneg %p105
        %p284 = pneg %p129
        %p285 = pneg %p126
        %p286 = pneg %p155
        %p287 = pneg %p152
        %s288 = sand.u32 %s142, 1
        %s289 = scalar_lea.sflag [#allocation4], %s288
        %s290 = sand.u32 %s142, 1
        %s291 = smul.addr %s290, 256
        %s292 = scalar_lea.vmem [#allocation10], %s291
        %s293 = smul.u32 32, %s24
        %s294 = smul.u32 32, %s24
        %v295 = vld [vmem:[%s250] sm:$0xff]
        %v296 = vld [vmem:[%s250 + $0x8] sm:$0xff]
        %v297 = vld [vmem:[%s250 + $0x10] sm:$0xff]
        %v298 = vld [vmem:[%s250 + $0x18] sm:$0xff]
        %v299 = vld [vmem:[%s250 + $0x20] sm:$0xff]
        %v300 = vld [vmem:[%s250 + $0x28] sm:$0xff]
        %v301 = vld [vmem:[%s250 + $0x30] sm:$0xff]
        %v302 = vld [vmem:[%s250 + $0x38] sm:$0xff]
        %v303 = vld [vmem:[%s250 + $0x40] sm:$0xff]
        %v304 = vld [vmem:[%s250 + $0x48] sm:$0xff]
        %v305 = vld [vmem:[%s250 + $0x50] sm:$0xff]
        %v306 = vld [vmem:[%s250 + $0x58] sm:$0xff]
        %v307 = vld [vmem:[%s250 + $0x60] sm:$0xff]
        %v308 = vld [vmem:[%s250 + $0x68] sm:$0xff]
        %v309 = vld [vmem:[%s250 + $0x70] sm:$0xff]
        %v310 = vld [vmem:[%s250 + $0x78] sm:$0xff]
        %v311 = vld [vmem:[%s250 + $0x80] sm:$0xff]
        %v312 = vld [vmem:[%s250 + $0x88] sm:$0xff]
        %v313 = vld [vmem:[%s250 + $0x90] sm:$0xff]
        %v314 = vld [vmem:[%s250 + $0x98] sm:$0xff]
        %v315 = vld [vmem:[%s250 + $0xa0] sm:$0xff]
        %v316 = vld [vmem:[%s250 + $0xa8] sm:$0xff]
        %v317 = vld [vmem:[%s250 + $0xb0] sm:$0xff]
        %v318 = vld [vmem:[%s250 + $0xb8] sm:$0xff]
        %v319 = vld [vmem:[%s250 + $0xc0] sm:$0xff]
        %v320 = vld [vmem:[%s250 + $0xc8] sm:$0xff]
        %v321 = vld [vmem:[%s250 + $0xd0] sm:$0xff]
        %v322 = vld [vmem:[%s250 + $0xd8] sm:$0xff]
        %v323 = vld [vmem:[%s250 + $0xe0] sm:$0xff]
        %v324 = vld [vmem:[%s250 + $0xe8] sm:$0xff]
        %v325 = vld [vmem:[%s250 + $0xf0] sm:$0xff]
        %v326 = vld [vmem:[%s250 + $0xf8] sm:$0xff]
        %v327 = vld [vmem:[#allocation5] sm:$0xff]
        %v328 = vld [vmem:[#allocation5 + $0x8] sm:$0xff]
        %v329 = vld [vmem:[#allocation5 + $0x10] sm:$0xff]
        %v330 = vld [vmem:[#allocation5 + $0x18] sm:$0xff]
        %v331 = vld [vmem:[#allocation5 + $0x20] sm:$0xff]
        %v332 = vld [vmem:[#allocation5 + $0x28] sm:$0xff]
        %v333 = vld [vmem:[#allocation5 + $0x30] sm:$0xff]
        %v334 = vld [vmem:[#allocation5 + $0x38] sm:$0xff]
        %v335 = vld [vmem:[#allocation5 + $0x40] sm:$0xff]
        %v336 = vld [vmem:[#allocation5 + $0x48] sm:$0xff]
        %v337 = vld [vmem:[#allocation5 + $0x50] sm:$0xff]
        %v338 = vld [vmem:[#allocation5 + $0x58] sm:$0xff]
        %v339 = vld [vmem:[#allocation5 + $0x60] sm:$0xff]
        %v340 = vld [vmem:[#allocation5 + $0x68] sm:$0xff]
        %v341 = vld [vmem:[#allocation5 + $0x70] sm:$0xff]
        %v342 = vld [vmem:[#allocation5 + $0x78] sm:$0xff]
        %v343 = vld [vmem:[#allocation5 + $0x80] sm:$0xff]
        %v344 = vld [vmem:[#allocation5 + $0x88] sm:$0xff]
        %v345 = vld [vmem:[#allocation5 + $0x90] sm:$0xff]
        %v346 = vld [vmem:[#allocation5 + $0x98] sm:$0xff]
        %v347 = vld [vmem:[#allocation5 + $0xa0] sm:$0xff]
        %v348 = vld [vmem:[#allocation5 + $0xa8] sm:$0xff]
        %v349 = vld [vmem:[#allocation5 + $0xb0] sm:$0xff]
        %v350 = vld [vmem:[#allocation5 + $0xb8] sm:$0xff]
        %v351 = vld [vmem:[#allocation5 + $0xc0] sm:$0xff]
        %v352 = vld [vmem:[#allocation5 + $0xc8] sm:$0xff]
        %v353 = vld [vmem:[#allocation5 + $0xd0] sm:$0xff]
        %v354 = vld [vmem:[#allocation5 + $0xd8] sm:$0xff]
        %v355 = vld [vmem:[#allocation5 + $0xe0] sm:$0xff]
        %v356 = vld [vmem:[#allocation5 + $0xe8] sm:$0xff]
        %v357 = vld [vmem:[#allocation5 + $0xf0] sm:$0xff]
        %v358 = vld [vmem:[#allocation5 + $0xf8] sm:$0xff]
        %v359 = vld [vmem:[#allocation7] sm:$0x3]
        %v361 = vperm.slane %v359, 0
        %v362 = vperm.slane %v359, 1
        %365 = vmatpush.msra.mxu0 %v357
        %366 = vmatpush.msra.mxu0 %v355
        %367 = vmatpush.msra.mxu0 %v353
        %368 = vmatpush.msra.mxu0 %v351
        %369 = vmatpush.msra.mxu0 %v349
        %370 = vmatpush.msra.mxu0 %v347
        %371 = vmatpush.msra.mxu0 %v345
        %372 = vmatpush.msra.mxu0 %v343
        %373 = vmatpush.msra.mxu0 %v341
        %374 = vmatpush.msra.mxu0 %v339
        %375 = vmatpush.msra.mxu0 %v337
        %376 = vmatpush.msra.mxu0 %v335
        %377 = vmatpush.msra.mxu0 %v333
        %378 = vmatpush.msra.mxu0 %v331
        %379 = vmatpush.msra.mxu0 %v329
        %380 = vmatpush.msra.mxu0 %v327
        %381 = vmatmul.f32.gmra.mxu0 %v295
        %v382 = vpop.f32.mrf.mxu0
        %v383 = vadd.f32 %v361, %v382
        %384 = vmatmul.f32.gmra.mxu0 %v296
        %v385 = vpop.f32.mrf.mxu0
        %v386 = vadd.f32 %v361, %v385
        %387 = vmatmul.f32.gmra.mxu0 %v297
        %v388 = vpop.f32.mrf.mxu0
        %v389 = vadd.f32 %v361, %v388
        %390 = vmatmul.f32.gmra.mxu0 %v298
        %v391 = vpop.f32.mrf.mxu0
        %v392 = vadd.f32 %v361, %v391
        %393 = vmatmul.f32.gmra.mxu0 %v299
        %v394 = vpop.f32.mrf.mxu0
        %v395 = vadd.f32 %v361, %v394
        %396 = vmatmul.f32.gmra.mxu0 %v300
        %v397 = vpop.f32.mrf.mxu0
        %v398 = vadd.f32 %v361, %v397
        %399 = vmatmul.f32.gmra.mxu0 %v301
        %v400 = vpop.f32.mrf.mxu0
        %v401 = vadd.f32 %v361, %v400
        %402 = vmatmul.f32.gmra.mxu0 %v302
        %v403 = vpop.f32.mrf.mxu0
        %v404 = vadd.f32 %v361, %v403
        %405 = vmatmul.f32.gmra.mxu0 %v303
        %v406 = vpop.f32.mrf.mxu0
        %v407 = vadd.f32 %v361, %v406
        %408 = vmatmul.f32.gmra.mxu0 %v304
        %v409 = vpop.f32.mrf.mxu0
        %v410 = vadd.f32 %v361, %v409
        %411 = vmatmul.f32.gmra.mxu0 %v305
        %v412 = vpop.f32.mrf.mxu0
        %v413 = vadd.f32 %v361, %v412
        %414 = vmatmul.f32.gmra.mxu0 %v306
        %v415 = vpop.f32.mrf.mxu0
        %v416 = vadd.f32 %v361, %v415
        %417 = vmatmul.f32.gmra.mxu0 %v307
        %v418 = vpop.f32.mrf.mxu0
        %v419 = vadd.f32 %v361, %v418
        %420 = vmatmul.f32.gmra.mxu0 %v308
        %v421 = vpop.f32.mrf.mxu0
        %v422 = vadd.f32 %v361, %v421
        %423 = vmatmul.f32.gmra.mxu0 %v309
        %v424 = vpop.f32.mrf.mxu0
        %v425 = vadd.f32 %v361, %v424
        %426 = vmatmul.f32.gmra.mxu0 %v310
        %v427 = vpop.f32.mrf.mxu0
        %v428 = vadd.f32 %v361, %v427
        %429 = vmatmul.f32.gmra.mxu0 %v311
        %v430 = vpop.f32.mrf.mxu0
        %v431 = vadd.f32 %v361, %v430
        %432 = vmatmul.f32.gmra.mxu0 %v312
        %v433 = vpop.f32.mrf.mxu0
        %v434 = vadd.f32 %v361, %v433
        %435 = vmatmul.f32.gmra.mxu0 %v313
        %v436 = vpop.f32.mrf.mxu0
        %v437 = vadd.f32 %v361, %v436
        %438 = vmatmul.f32.gmra.mxu0 %v314
        %v439 = vpop.f32.mrf.mxu0
        %v440 = vadd.f32 %v361, %v439
        %441 = vmatmul.f32.gmra.mxu0 %v315
        %v442 = vpop.f32.mrf.mxu0
        %v443 = vadd.f32 %v361, %v442
        %444 = vmatmul.f32.gmra.mxu0 %v316
        %v445 = vpop.f32.mrf.mxu0
        %v446 = vadd.f32 %v361, %v445
        %447 = vmatmul.f32.gmra.mxu0 %v317
        %v448 = vpop.f32.mrf.mxu0
        %v449 = vadd.f32 %v361, %v448
        %450 = vmatmul.f32.gmra.mxu0 %v318
        %v451 = vpop.f32.mrf.mxu0
        %v452 = vadd.f32 %v361, %v451
        %453 = vmatmul.f32.gmra.mxu0 %v319
        %v454 = vpop.f32.mrf.mxu0
        %v455 = vadd.f32 %v361, %v454
        %456 = vmatmul.f32.gmra.mxu0 %v320
        %v457 = vpop.f32.mrf.mxu0
        %v458 = vadd.f32 %v361, %v457
        %459 = vmatmul.f32.gmra.mxu0 %v321
        %v460 = vpop.f32.mrf.mxu0
        %v461 = vadd.f32 %v361, %v460
        %462 = vmatmul.f32.gmra.mxu0 %v322
        %v463 = vpop.f32.mrf.mxu0
        %v464 = vadd.f32 %v361, %v463
        %465 = vmatmul.f32.gmra.mxu0 %v323
        %v466 = vpop.f32.mrf.mxu0
        %v467 = vadd.f32 %v361, %v466
        %468 = vmatmul.f32.gmra.mxu0 %v324
        %v469 = vpop.f32.mrf.mxu0
        %v470 = vadd.f32 %v361, %v469
        %471 = vmatmul.f32.gmra.mxu0 %v325
        %v472 = vpop.f32.mrf.mxu0
        %v473 = vadd.f32 %v361, %v472
        %474 = vmatmul.f32.gmra.mxu0 %v326
        %v475 = vpop.f32.mrf.mxu0
        %v476 = vadd.f32 %v361, %v475
        %477 = vdwg.mxu0
        %478 = vmatpush.msra.mxu0 %v358
        %479 = vmatpush.msra.mxu0 %v356
        %480 = vmatpush.msra.mxu0 %v354
        %481 = vmatpush.msra.mxu0 %v352
        %482 = vmatpush.msra.mxu0 %v350
        %483 = vmatpush.msra.mxu0 %v348
        %484 = vmatpush.msra.mxu0 %v346
        %485 = vmatpush.msra.mxu0 %v344
        %486 = vmatpush.msra.mxu0 %v342
        %487 = vmatpush.msra.mxu0 %v340
        %488 = vmatpush.msra.mxu0 %v338
        %489 = vmatpush.msra.mxu0 %v336
        %490 = vmatpush.msra.mxu0 %v334
        %491 = vmatpush.msra.mxu0 %v332
        %492 = vmatpush.msra.mxu0 %v330
        %493 = vmatpush.msra.mxu0 %v328
        %494 = vmatmul.f32.gmra.mxu0 %v295
        %v495 = vpop.f32.mrf.mxu0
        %v496 = vadd.f32 %v362, %v495
        %497 = vmatmul.f32.gmra.mxu0 %v296
        %v498 = vpop.f32.mrf.mxu0
        %v499 = vadd.f32 %v362, %v498
        %500 = vmatmul.f32.gmra.mxu0 %v297
        %v501 = vpop.f32.mrf.mxu0
        %v502 = vadd.f32 %v362, %v501
        %503 = vmatmul.f32.gmra.mxu0 %v298
        %v504 = vpop.f32.mrf.mxu0
        %v505 = vadd.f32 %v362, %v504
        %506 = vmatmul.f32.gmra.mxu0 %v299
        %v507 = vpop.f32.mrf.mxu0
        %v508 = vadd.f32 %v362, %v507
        %509 = vmatmul.f32.gmra.mxu0 %v300
        %v510 = vpop.f32.mrf.mxu0
        %v511 = vadd.f32 %v362, %v510
        %512 = vmatmul.f32.gmra.mxu0 %v301
        %v513 = vpop.f32.mrf.mxu0
        %v514 = vadd.f32 %v362, %v513
        %515 = vmatmul.f32.gmra.mxu0 %v302
        %v516 = vpop.f32.mrf.mxu0
        %v517 = vadd.f32 %v362, %v516
        %518 = vmatmul.f32.gmra.mxu0 %v303
        %v519 = vpop.f32.mrf.mxu0
        %v520 = vadd.f32 %v362, %v519
        %521 = vmatmul.f32.gmra.mxu0 %v304
        %v522 = vpop.f32.mrf.mxu0
        %v523 = vadd.f32 %v362, %v522
        %524 = vmatmul.f32.gmra.mxu0 %v305
        %v525 = vpop.f32.mrf.mxu0
        %v526 = vadd.f32 %v362, %v525
        %527 = vmatmul.f32.gmra.mxu0 %v306
        %v528 = vpop.f32.mrf.mxu0
        %v529 = vadd.f32 %v362, %v528
        %530 = vmatmul.f32.gmra.mxu0 %v307
        %v531 = vpop.f32.mrf.mxu0
        %v532 = vadd.f32 %v362, %v531
        %533 = vmatmul.f32.gmra.mxu0 %v308
        %v534 = vpop.f32.mrf.mxu0
        %v535 = vadd.f32 %v362, %v534
        %536 = vmatmul.f32.gmra.mxu0 %v309
        %v537 = vpop.f32.mrf.mxu0
        %v538 = vadd.f32 %v362, %v537
        %539 = vmatmul.f32.gmra.mxu0 %v310
        %v540 = vpop.f32.mrf.mxu0
        %v541 = vadd.f32 %v362, %v540
        %542 = vmatmul.f32.gmra.mxu0 %v311
        %v543 = vpop.f32.mrf.mxu0
        %v544 = vadd.f32 %v362, %v543
        %545 = vmatmul.f32.gmra.mxu0 %v312
        %v546 = vpop.f32.mrf.mxu0
        %v547 = vadd.f32 %v362, %v546
        %548 = vmatmul.f32.gmra.mxu0 %v313
        %v549 = vpop.f32.mrf.mxu0
        %v550 = vadd.f32 %v362, %v549
        %551 = vmatmul.f32.gmra.mxu0 %v314
        %v552 = vpop.f32.mrf.mxu0
        %v553 = vadd.f32 %v362, %v552
        %554 = vmatmul.f32.gmra.mxu0 %v315
        %v555 = vpop.f32.mrf.mxu0
        %v556 = vadd.f32 %v362, %v555
        %557 = vmatmul.f32.gmra.mxu0 %v316
        %v558 = vpop.f32.mrf.mxu0
        %v559 = vadd.f32 %v362, %v558
        %560 = vmatmul.f32.gmra.mxu0 %v317
        %v561 = vpop.f32.mrf.mxu0
        %v562 = vadd.f32 %v362, %v561
        %563 = vmatmul.f32.gmra.mxu0 %v318
        %v564 = vpop.f32.mrf.mxu0
        %v565 = vadd.f32 %v362, %v564
        %566 = vmatmul.f32.gmra.mxu0 %v319
        %v567 = vpop.f32.mrf.mxu0
        %v568 = vadd.f32 %v362, %v567
        %569 = vmatmul.f32.gmra.mxu0 %v320
        %v570 = vpop.f32.mrf.mxu0
        %v571 = vadd.f32 %v362, %v570
        %572 = vmatmul.f32.gmra.mxu0 %v321
        %v573 = vpop.f32.mrf.mxu0
        %v574 = vadd.f32 %v362, %v573
        %575 = vmatmul.f32.gmra.mxu0 %v322
        %v576 = vpop.f32.mrf.mxu0
        %v577 = vadd.f32 %v362, %v576
        %578 = vmatmul.f32.gmra.mxu0 %v323
        %v579 = vpop.f32.mrf.mxu0
        %v580 = vadd.f32 %v362, %v579
        %581 = vmatmul.f32.gmra.mxu0 %v324
        %v582 = vpop.f32.mrf.mxu0
        %v583 = vadd.f32 %v362, %v582
        %584 = vmatmul.f32.gmra.mxu0 %v325
        %v585 = vpop.f32.mrf.mxu0
        %v586 = vadd.f32 %v362, %v585
        %587 = vmatmul.f32.gmra.mxu0 %v326
        %v588 = vpop.f32.mrf.mxu0
        %v589 = vadd.f32 %v362, %v588
        %590 = vdwg.mxu0
        %v591 = vmax.f32 %v383, 0.0
        %v592 = vmax.f32 %v496, 0.0
        %v593 = vmax.f32 %v386, 0.0
        %v594 = vmax.f32 %v499, 0.0
        %v595 = vmax.f32 %v389, 0.0
        %v596 = vmax.f32 %v502, 0.0
        %v597 = vmax.f32 %v392, 0.0
        %v598 = vmax.f32 %v505, 0.0
        %v599 = vmax.f32 %v395, 0.0
        %v600 = vmax.f32 %v508, 0.0
        %v601 = vmax.f32 %v398, 0.0
        %v602 = vmax.f32 %v511, 0.0
        %v603 = vmax.f32 %v401, 0.0
        %v604 = vmax.f32 %v514, 0.0
        %v605 = vmax.f32 %v404, 0.0
        %v606 = vmax.f32 %v517, 0.0
        %v607 = vmax.f32 %v407, 0.0
        %v608 = vmax.f32 %v520, 0.0
        %v609 = vmax.f32 %v410, 0.0
        %v610 = vmax.f32 %v523, 0.0
        %v611 = vmax.f32 %v413, 0.0
        %v612 = vmax.f32 %v526, 0.0
        %v613 = vmax.f32 %v416, 0.0
        %v614 = vmax.f32 %v529, 0.0
        %v615 = vmax.f32 %v419, 0.0
        %v616 = vmax.f32 %v532, 0.0
        %v617 = vmax.f32 %v422, 0.0
        %v618 = vmax.f32 %v535, 0.0
        %v619 = vmax.f32 %v425, 0.0
        %v620 = vmax.f32 %v538, 0.0
        %v621 = vmax.f32 %v428, 0.0
        %v622 = vmax.f32 %v541, 0.0
        %v623 = vmax.f32 %v431, 0.0
        %v624 = vmax.f32 %v544, 0.0
        %v625 = vmax.f32 %v434, 0.0
        %v626 = vmax.f32 %v547, 0.0
        %v627 = vmax.f32 %v437, 0.0
        %v628 = vmax.f32 %v550, 0.0
        %v629 = vmax.f32 %v440, 0.0
        %v630 = vmax.f32 %v553, 0.0
        %v631 = vmax.f32 %v443, 0.0
        %v632 = vmax.f32 %v556, 0.0
        %v633 = vmax.f32 %v446, 0.0
        %v634 = vmax.f32 %v559, 0.0
        %v635 = vmax.f32 %v449, 0.0
        %v636 = vmax.f32 %v562, 0.0
        %v637 = vmax.f32 %v452, 0.0
        %v638 = vmax.f32 %v565, 0.0
        %v639 = vmax.f32 %v455, 0.0
        %v640 = vmax.f32 %v568, 0.0
        %v641 = vmax.f32 %v458, 0.0
        %v642 = vmax.f32 %v571, 0.0
        %v643 = vmax.f32 %v461, 0.0
        %v644 = vmax.f32 %v574, 0.0
        %v645 = vmax.f32 %v464, 0.0
        %v646 = vmax.f32 %v577, 0.0
        %v647 = vmax.f32 %v467, 0.0
        %v648 = vmax.f32 %v580, 0.0
        %v649 = vmax.f32 %v470, 0.0
        %v650 = vmax.f32 %v583, 0.0
        %v651 = vmax.f32 %v473, 0.0
        %v652 = vmax.f32 %v586, 0.0
        %v653 = vmax.f32 %v476, 0.0
        %v654 = vmax.f32 %v589, 0.0
        %v655 = vld [vmem:[#allocation8] sm:$0xff]
        %v656 = vld [vmem:[#allocation8 + $0x8] sm:$0xff]
        %v657 = vld [vmem:[#allocation8 + $0x10] sm:$0xff]
        %v658 = vld [vmem:[#allocation8 + $0x18] sm:$0xff]
        %v659 = vld [vmem:[#allocation8 + $0x20] sm:$0xff]
        %v660 = vld [vmem:[#allocation8 + $0x28] sm:$0xff]
        %v661 = vld [vmem:[#allocation8 + $0x30] sm:$0xff]
        %v662 = vld [vmem:[#allocation8 + $0x38] sm:$0xff]
        %v663 = vld [vmem:[#allocation8 + $0x40] sm:$0xff]
        %v664 = vld [vmem:[#allocation8 + $0x48] sm:$0xff]
        %v665 = vld [vmem:[#allocation8 + $0x50] sm:$0xff]
        %v666 = vld [vmem:[#allocation8 + $0x58] sm:$0xff]
        %v667 = vld [vmem:[#allocation8 + $0x60] sm:$0xff]
        %v668 = vld [vmem:[#allocation8 + $0x68] sm:$0xff]
        %v669 = vld [vmem:[#allocation8 + $0x70] sm:$0xff]
        %v670 = vld [vmem:[#allocation8 + $0x78] sm:$0xff]
        %v671 = vld [vmem:[#allocation8 + $0x80] sm:$0xff]
        %v672 = vld [vmem:[#allocation8 + $0x88] sm:$0xff]
        %v673 = vld [vmem:[#allocation8 + $0x90] sm:$0xff]
        %v674 = vld [vmem:[#allocation8 + $0x98] sm:$0xff]
        %v675 = vld [vmem:[#allocation8 + $0xa0] sm:$0xff]
        %v676 = vld [vmem:[#allocation8 + $0xa8] sm:$0xff]
        %v677 = vld [vmem:[#allocation8 + $0xb0] sm:$0xff]
        %v678 = vld [vmem:[#allocation8 + $0xb8] sm:$0xff]
        %v679 = vld [vmem:[#allocation8 + $0xc0] sm:$0xff]
        %v680 = vld [vmem:[#allocation8 + $0xc8] sm:$0xff]
        %v681 = vld [vmem:[#allocation8 + $0xd0] sm:$0xff]
        %v682 = vld [vmem:[#allocation8 + $0xd8] sm:$0xff]
        %v683 = vld [vmem:[#allocation8 + $0xe0] sm:$0xff]
        %v684 = vld [vmem:[#allocation8 + $0xe8] sm:$0xff]
        %v685 = vld [vmem:[#allocation8 + $0xf0] sm:$0xff]
        %v686 = vld [vmem:[#allocation8 + $0xf8] sm:$0xff]
        %v687 = vld [vmem:[%s4] sm:$0x1]
        %v689 = vperm.slane %v687, 0
        %691 = vmatpush.msra.mxu0 %v670
        %692 = vmatpush.msra.mxu0 %v669
        %693 = vmatpush.msra.mxu0 %v668
        %694 = vmatpush.msra.mxu0 %v667
        %695 = vmatpush.msra.mxu0 %v666
        %696 = vmatpush.msra.mxu0 %v665
        %697 = vmatpush.msra.mxu0 %v664
        %698 = vmatpush.msra.mxu0 %v663
        %699 = vmatpush.msra.mxu0 %v662
        %700 = vmatpush.msra.mxu0 %v661
        %701 = vmatpush.msra.mxu0 %v660
        %702 = vmatpush.msra.mxu0 %v659
        %703 = vmatpush.msra.mxu0 %v658
        %704 = vmatpush.msra.mxu0 %v657
        %705 = vmatpush.msra.mxu0 %v656
        %706 = vmatpush.msra.mxu0 %v655
        %707 = vmatmul.f32.gmra.mxu0 %v591
        %v708 = vpop.f32.mrf.mxu0
        %v709 = vadd.f32 %v689, %v708
        %710 = vmatmul.f32.gmra.mxu0 %v593
        %v711 = vpop.f32.mrf.mxu0
        %v712 = vadd.f32 %v689, %v711
        %713 = vmatmul.f32.gmra.mxu0 %v595
        %v714 = vpop.f32.mrf.mxu0
        %v715 = vadd.f32 %v689, %v714
        %716 = vmatmul.f32.gmra.mxu0 %v597
        %v717 = vpop.f32.mrf.mxu0
        %v718 = vadd.f32 %v689, %v717
        %719 = vmatmul.f32.gmra.mxu0 %v599
        %v720 = vpop.f32.mrf.mxu0
        %v721 = vadd.f32 %v689, %v720
        %722 = vmatmul.f32.gmra.mxu0 %v601
        %v723 = vpop.f32.mrf.mxu0
        %v724 = vadd.f32 %v689, %v723
        %725 = vmatmul.f32.gmra.mxu0 %v603
        %v726 = vpop.f32.mrf.mxu0
        %v727 = vadd.f32 %v689, %v726
        %728 = vmatmul.f32.gmra.mxu0 %v605
        %v729 = vpop.f32.mrf.mxu0
        %v730 = vadd.f32 %v689, %v729
        %731 = vmatmul.f32.gmra.mxu0 %v607
        %v732 = vpop.f32.mrf.mxu0
        %v733 = vadd.f32 %v689, %v732
        %734 = vmatmul.f32.gmra.mxu0 %v609
        %v735 = vpop.f32.mrf.mxu0
        %v736 = vadd.f32 %v689, %v735
        %737 = vmatmul.f32.gmra.mxu0 %v611
        %v738 = vpop.f32.mrf.mxu0
        %v739 = vadd.f32 %v689, %v738
        %740 = vmatmul.f32.gmra.mxu0 %v613
        %v741 = vpop.f32.mrf.mxu0
        %v742 = vadd.f32 %v689, %v741
        %743 = vmatmul.f32.gmra.mxu0 %v615
        %v744 = vpop.f32.mrf.mxu0
        %v745 = vadd.f32 %v689, %v744
        %746 = vmatmul.f32.gmra.mxu0 %v617
        %v747 = vpop.f32.mrf.mxu0
        %v748 = vadd.f32 %v689, %v747
        %749 = vmatmul.f32.gmra.mxu0 %v619
        %v750 = vpop.f32.mrf.mxu0
        %v751 = vadd.f32 %v689, %v750
        %752 = vmatmul.f32.gmra.mxu0 %v621
        %v753 = vpop.f32.mrf.mxu0
        %v754 = vadd.f32 %v689, %v753
        %755 = vmatmul.f32.gmra.mxu0 %v623
        %v756 = vpop.f32.mrf.mxu0
        %v757 = vadd.f32 %v689, %v756
        %758 = vmatmul.f32.gmra.mxu0 %v625
        %v759 = vpop.f32.mrf.mxu0
        %v760 = vadd.f32 %v689, %v759
        %761 = vmatmul.f32.gmra.mxu0 %v627
        %v762 = vpop.f32.mrf.mxu0
        %v763 = vadd.f32 %v689, %v762
        %764 = vmatmul.f32.gmra.mxu0 %v629
        %v765 = vpop.f32.mrf.mxu0
        %v766 = vadd.f32 %v689, %v765
        %767 = vmatmul.f32.gmra.mxu0 %v631
        %v768 = vpop.f32.mrf.mxu0
        %v769 = vadd.f32 %v689, %v768
        %770 = vmatmul.f32.gmra.mxu0 %v633
        %v771 = vpop.f32.mrf.mxu0
        %v772 = vadd.f32 %v689, %v771
        %773 = vmatmul.f32.gmra.mxu0 %v635
        %v774 = vpop.f32.mrf.mxu0
        %v775 = vadd.f32 %v689, %v774
        %776 = vmatmul.f32.gmra.mxu0 %v637
        %v777 = vpop.f32.mrf.mxu0
        %v778 = vadd.f32 %v689, %v777
        %779 = vmatmul.f32.gmra.mxu0 %v639
        %v780 = vpop.f32.mrf.mxu0
        %v781 = vadd.f32 %v689, %v780
        %782 = vmatmul.f32.gmra.mxu0 %v641
        %v783 = vpop.f32.mrf.mxu0
        %v784 = vadd.f32 %v689, %v783
        %785 = vmatmul.f32.gmra.mxu0 %v643
        %v786 = vpop.f32.mrf.mxu0
        %v787 = vadd.f32 %v689, %v786
        %788 = vmatmul.f32.gmra.mxu0 %v645
        %v789 = vpop.f32.mrf.mxu0
        %v790 = vadd.f32 %v689, %v789
        %791 = vmatmul.f32.gmra.mxu0 %v647
        %v792 = vpop.f32.mrf.mxu0
        %v793 = vadd.f32 %v689, %v792
        %794 = vmatmul.f32.gmra.mxu0 %v649
        %v795 = vpop.f32.mrf.mxu0
        %v796 = vadd.f32 %v689, %v795
        %797 = vmatmul.f32.gmra.mxu0 %v651
        %v798 = vpop.f32.mrf.mxu0
        %v799 = vadd.f32 %v689, %v798
        %800 = vmatmul.f32.gmra.mxu0 %v653
        %v801 = vpop.f32.mrf.mxu0
        %v802 = vadd.f32 %v689, %v801
        %803 = vdwg.mxu0
        %804 = vmatpush.msra.mxu0 %v686
        %805 = vmatpush.msra.mxu0 %v685
        %806 = vmatpush.msra.mxu0 %v684
        %807 = vmatpush.msra.mxu0 %v683
        %808 = vmatpush.msra.mxu0 %v682
        %809 = vmatpush.msra.mxu0 %v681
        %810 = vmatpush.msra.mxu0 %v680
        %811 = vmatpush.msra.mxu0 %v679
        %812 = vmatpush.msra.mxu0 %v678
        %813 = vmatpush.msra.mxu0 %v677
        %814 = vmatpush.msra.mxu0 %v676
        %815 = vmatpush.msra.mxu0 %v675
        %816 = vmatpush.msra.mxu0 %v674
        %817 = vmatpush.msra.mxu0 %v673
        %818 = vmatpush.msra.mxu0 %v672
        %819 = vmatpush.msra.mxu0 %v671
        %820 = vmatmul.f32.gmra.mxu0 %v592
        %v821 = vpop.f32.mrf.mxu0
        %v822 = vadd.f32 %v709, %v821
        %823 = vmatmul.f32.gmra.mxu0 %v594
        %v824 = vpop.f32.mrf.mxu0
        %v825 = vadd.f32 %v712, %v824
        %826 = vmatmul.f32.gmra.mxu0 %v596
        %v827 = vpop.f32.mrf.mxu0
        %v828 = vadd.f32 %v715, %v827
        %829 = vmatmul.f32.gmra.mxu0 %v598
        %v830 = vpop.f32.mrf.mxu0
        %v831 = vadd.f32 %v718, %v830
        %832 = vmatmul.f32.gmra.mxu0 %v600
        %v833 = vpop.f32.mrf.mxu0
        %v834 = vadd.f32 %v721, %v833
        %835 = vmatmul.f32.gmra.mxu0 %v602
        %v836 = vpop.f32.mrf.mxu0
        %v837 = vadd.f32 %v724, %v836
        %838 = vmatmul.f32.gmra.mxu0 %v604
        %v839 = vpop.f32.mrf.mxu0
        %v840 = vadd.f32 %v727, %v839
        %841 = vmatmul.f32.gmra.mxu0 %v606
        %v842 = vpop.f32.mrf.mxu0
        %v843 = vadd.f32 %v730, %v842
        %844 = vmatmul.f32.gmra.mxu0 %v608
        %v845 = vpop.f32.mrf.mxu0
        %v846 = vadd.f32 %v733, %v845
        %847 = vmatmul.f32.gmra.mxu0 %v610
        %v848 = vpop.f32.mrf.mxu0
        %v849 = vadd.f32 %v736, %v848
        %850 = vmatmul.f32.gmra.mxu0 %v612
        %v851 = vpop.f32.mrf.mxu0
        %v852 = vadd.f32 %v739, %v851
        %853 = vmatmul.f32.gmra.mxu0 %v614
        %v854 = vpop.f32.mrf.mxu0
        %v855 = vadd.f32 %v742, %v854
        %856 = vmatmul.f32.gmra.mxu0 %v616
        %v857 = vpop.f32.mrf.mxu0
        %v858 = vadd.f32 %v745, %v857
        %859 = vmatmul.f32.gmra.mxu0 %v618
        %v860 = vpop.f32.mrf.mxu0
        %v861 = vadd.f32 %v748, %v860
        %862 = vmatmul.f32.gmra.mxu0 %v620
        %v863 = vpop.f32.mrf.mxu0
        %v864 = vadd.f32 %v751, %v863
        %865 = vmatmul.f32.gmra.mxu0 %v622
        %v866 = vpop.f32.mrf.mxu0
        %v867 = vadd.f32 %v754, %v866
        %868 = vmatmul.f32.gmra.mxu0 %v624
        %v869 = vpop.f32.mrf.mxu0
        %v870 = vadd.f32 %v757, %v869
        %871 = vmatmul.f32.gmra.mxu0 %v626
        %v872 = vpop.f32.mrf.mxu0
        %v873 = vadd.f32 %v760, %v872
        %874 = vmatmul.f32.gmra.mxu0 %v628
        %v875 = vpop.f32.mrf.mxu0
        %v876 = vadd.f32 %v763, %v875
        %877 = vmatmul.f32.gmra.mxu0 %v630
        %v878 = vpop.f32.mrf.mxu0
        %v879 = vadd.f32 %v766, %v878
        %880 = vmatmul.f32.gmra.mxu0 %v632
        %v881 = vpop.f32.mrf.mxu0
        %v882 = vadd.f32 %v769, %v881
        %883 = vmatmul.f32.gmra.mxu0 %v634
        %v884 = vpop.f32.mrf.mxu0
        %v885 = vadd.f32 %v772, %v884
        %886 = vmatmul.f32.gmra.mxu0 %v636
        %v887 = vpop.f32.mrf.mxu0
        %v888 = vadd.f32 %v775, %v887
        %889 = vmatmul.f32.gmra.mxu0 %v638
        %v890 = vpop.f32.mrf.mxu0
        %v891 = vadd.f32 %v778, %v890
        %892 = vmatmul.f32.gmra.mxu0 %v640
        %v893 = vpop.f32.mrf.mxu0
        %v894 = vadd.f32 %v781, %v893
        %895 = vmatmul.f32.gmra.mxu0 %v642
        %v896 = vpop.f32.mrf.mxu0
        %v897 = vadd.f32 %v784, %v896
        %898 = vmatmul.f32.gmra.mxu0 %v644
        %v899 = vpop.f32.mrf.mxu0
        %v900 = vadd.f32 %v787, %v899
        %901 = vmatmul.f32.gmra.mxu0 %v646
        %v902 = vpop.f32.mrf.mxu0
        %v903 = vadd.f32 %v790, %v902
        %904 = vmatmul.f32.gmra.mxu0 %v648
        %v905 = vpop.f32.mrf.mxu0
        %v906 = vadd.f32 %v793, %v905
        %907 = vmatmul.f32.gmra.mxu0 %v650
        %v908 = vpop.f32.mrf.mxu0
        %v909 = vadd.f32 %v796, %v908
        %910 = vmatmul.f32.gmra.mxu0 %v652
        %v911 = vpop.f32.mrf.mxu0
        %v912 = vadd.f32 %v799, %v911
        %913 = vmatmul.f32.gmra.mxu0 %v654
        %v914 = vpop.f32.mrf.mxu0
        %v915 = vadd.f32 %v802, %v914
        %916 = vdwg.mxu0
        %v917 = vadd.f32 %v822, %v295
        %v918 = vadd.f32 %v825, %v296
        %v919 = vadd.f32 %v828, %v297
        %v920 = vadd.f32 %v831, %v298
        %v921 = vadd.f32 %v834, %v299
        %v922 = vadd.f32 %v837, %v300
        %v923 = vadd.f32 %v840, %v301
        %v924 = vadd.f32 %v843, %v302
        %v925 = vadd.f32 %v846, %v303
        %v926 = vadd.f32 %v849, %v304
        %v927 = vadd.f32 %v852, %v305
        %v928 = vadd.f32 %v855, %v306
        %v929 = vadd.f32 %v858, %v307
        %v930 = vadd.f32 %v861, %v308
        %v931 = vadd.f32 %v864, %v309
        %v932 = vadd.f32 %v867, %v310
        %v933 = vadd.f32 %v870, %v311
        %v934 = vadd.f32 %v873, %v312
        %v935 = vadd.f32 %v876, %v313
        %v936 = vadd.f32 %v879, %v314
        %v937 = vadd.f32 %v882, %v315
        %v938 = vadd.f32 %v885, %v316
        %v939 = vadd.f32 %v888, %v317
        %v940 = vadd.f32 %v891, %v318
        %v941 = vadd.f32 %v894, %v319
        %v942 = vadd.f32 %v897, %v320
        %v943 = vadd.f32 %v900, %v321
        %v944 = vadd.f32 %v903, %v322
        %v945 = vadd.f32 %v906, %v323
        %v946 = vadd.f32 %v909, %v324
        %v947 = vadd.f32 %v912, %v325
        %v948 = vadd.f32 %v915, %v326
        %v949 = vmax.f32 %v917, 0.0
        %v950 = vmax.f32 %v918, 0.0
        %v951 = vmax.f32 %v919, 0.0
        %v952 = vmax.f32 %v920, 0.0
        %v953 = vmax.f32 %v921, 0.0
        %v954 = vmax.f32 %v922, 0.0
        %v955 = vmax.f32 %v923, 0.0
        %v956 = vmax.f32 %v924, 0.0
        %v957 = vmax.f32 %v925, 0.0
        %v958 = vmax.f32 %v926, 0.0
        %v959 = vmax.f32 %v927, 0.0
        %v960 = vmax.f32 %v928, 0.0
        %v961 = vmax.f32 %v929, 0.0
        %v962 = vmax.f32 %v930, 0.0
        %v963 = vmax.f32 %v931, 0.0
        %v964 = vmax.f32 %v932, 0.0
        %v965 = vmax.f32 %v933, 0.0
        %v966 = vmax.f32 %v934, 0.0
        %v967 = vmax.f32 %v935, 0.0
        %v968 = vmax.f32 %v936, 0.0
        %v969 = vmax.f32 %v937, 0.0
        %v970 = vmax.f32 %v938, 0.0
        %v971 = vmax.f32 %v939, 0.0
        %v972 = vmax.f32 %v940, 0.0
        %v973 = vmax.f32 %v941, 0.0
        %v974 = vmax.f32 %v942, 0.0
        %v975 = vmax.f32 %v943, 0.0
        %v976 = vmax.f32 %v944, 0.0
        %v977 = vmax.f32 %v945, 0.0
        %v978 = vmax.f32 %v946, 0.0
        %v979 = vmax.f32 %v947, 0.0
        %v980 = vmax.f32 %v948, 0.0
        %981 = vst [vmem:[%s292] sm:$0xff] %v949
        %982 = vst [vmem:[%s292 + $0x8] sm:$0xff] %v950
        %983 = vst [vmem:[%s292 + $0x10] sm:$0xff] %v951
        %984 = vst [vmem:[%s292 + $0x18] sm:$0xff] %v952
        %985 = vst [vmem:[%s292 + $0x20] sm:$0xff] %v953
        %986 = vst [vmem:[%s292 + $0x28] sm:$0xff] %v954
        %987 = vst [vmem:[%s292 + $0x30] sm:$0xff] %v955
        %988 = vst [vmem:[%s292 + $0x38] sm:$0xff] %v956
        %989 = vst [vmem:[%s292 + $0x40] sm:$0xff] %v957
        %990 = vst [vmem:[%s292 + $0x48] sm:$0xff] %v958
        %991 = vst [vmem:[%s292 + $0x50] sm:$0xff] %v959
        %992 = vst [vmem:[%s292 + $0x58] sm:$0xff] %v960
        %993 = vst [vmem:[%s292 + $0x60] sm:$0xff] %v961
        %994 = vst [vmem:[%s292 + $0x68] sm:$0xff] %v962
        %995 = vst [vmem:[%s292 + $0x70] sm:$0xff] %v963
        %996 = vst [vmem:[%s292 + $0x78] sm:$0xff] %v964
        %997 = vst [vmem:[%s292 + $0x80] sm:$0xff] %v965
        %998 = vst [vmem:[%s292 + $0x88] sm:$0xff] %v966
        %999 = vst [vmem:[%s292 + $0x90] sm:$0xff] %v967
        %1000 = vst [vmem:[%s292 + $0x98] sm:$0xff] %v968
        %1001 = vst [vmem:[%s292 + $0xa0] sm:$0xff] %v969
        %1002 = vst [vmem:[%s292 + $0xa8] sm:$0xff] %v970
        %1003 = vst [vmem:[%s292 + $0xb0] sm:$0xff] %v971
        %1004 = vst [vmem:[%s292 + $0xb8] sm:$0xff] %v972
        %1005 = vst [vmem:[%s292 + $0xc0] sm:$0xff] %v973
        %1006 = vst [vmem:[%s292 + $0xc8] sm:$0xff] %v974
        %1007 = vst [vmem:[%s292 + $0xd0] sm:$0xff] %v975
        %1008 = vst [vmem:[%s292 + $0xd8] sm:$0xff] %v976
        %1009 = vst [vmem:[%s292 + $0xe0] sm:$0xff] %v977
        %1010 = vst [vmem:[%s292 + $0xe8] sm:$0xff] %v978
        %1011 = vst [vmem:[%s292 + $0xf0] sm:$0xff] %v979
        %1012 = vst [vmem:[%s292 + $0xf8] sm:$0xff] %v980
        %s1013 = sand.u32 %s142, 1
        %s1014 = scalar_lea.sflag [#allocation4], %s1013
        %s1015 = sand.u32 %s142, 1
        %s1016 = smul.addr %s1015, 256
        %s1017 = scalar_lea.vmem [#allocation10], %s1016
        // Predicated region
        $region57: #{tpu_custom_call.1} parent=39 // pred_check
          %p1018 = pneg %p152
        $region58: #{tpu_custom_call.1} parent=39 // pred_check_branch
          %1020 = sbr.rel (%p1018) target = $region60
        $region59: #{tpu_custom_call.1} parent=39 // pred_region
          %s1021 = smul.u32 32, %s24
          %1023 = vsyncadd %s1014, 0
          %s1024 = smul.addr %s1021, 8
          %s1025 = scalar_lea.hbm %s5, %s1024
          %s1026 = sshll.u32 %s1017, 4
          %s1027 = int_to_ptr.vmem [resolvable:$true] %s1026
          %s1028 = sshll.u32 %s1025, 4
          %s1029 = int_to_ptr.hbm [resolvable:$true] %s1028
          %1034 = dma.vmem_to_hbm [thread:$0]  %s1027, 4096, %s1029, %s1014, 128, 128, 8
        $region60: #{tpu_custom_call.1} parent=39 // pred_fallthru
          _
      $region40: #{tpu_custom_call.1} parent=5 // pred_fallthru
        _
      %p1035 = scmp.le.s32.totalorder 2, %s19
      // Predicated region
      $region61: #{tpu_custom_call.1} parent=5 // pred_check
        %p1036 = pneg %p1035
      $region62: #{tpu_custom_call.1} parent=5 // pred_check_branch
        %1038 = sbr.rel (%p1036) target = $region64
      $region63: #{tpu_custom_call.1} parent=5 // pred_region
        %s1039 = ssub.s32 %s19, 2
        // Predicated region
        $region65: #{tpu_custom_call.1} parent=63 // pred_check
          %p1040 = pneg %p158
        $region66: #{tpu_custom_call.1} parent=63 // pred_check_branch
          %1042 = sbr.rel (%p1040) target = $region68
        $region67: #{tpu_custom_call.1} parent=63 // pred_region
          %s1043 = sand.u32 %s143, 1
          %s1044 = scalar_lea.sflag [#allocation4], %s1043
          %s1045 = sand.u32 %s143, 1
          %s1046 = smul.addr %s1045, 256
          %s1047 = scalar_lea.vmem [#allocation10], %s1046
          %1049 = dma.done %s1044, 4096
        $region68: #{tpu_custom_call.1} parent=63 // pred_fallthru
          _
      $region64: #{tpu_custom_call.1} parent=5 // pred_fallthru
        _
    $region6: #{tpu_custom_call.1} parent=1 // loop_footer
      %s23 = sadd.s32 1, %s19
    $region7: #{tpu_custom_call.1} parent=1 // loop_footer_branch
      %18 = sbr.rel target = $region3
    $region8: #{tpu_custom_call.1} parent=1 // loop_exit
      _
    %1050 = vsyncpa [#allocation3], 1
    %s1051 = scalar_lea.sflag [#allocation3], 1
    %1052 = vsyncpa %s1051, 1
    %1053 = vsyncpa [#allocation6], 1
    %1054 = vsyncpa [#allocation9], 1
    %1055 = vsyncpa [#allocation4], 1
    %s1056 = scalar_lea.sflag [#allocation4], 1
    %1057 = vsyncpa %s1056, 1

</llo_original>
